<compile_context>
chip_gen: v7x
topology: tpu7x:2x2x1
jax: 0.10.0
libtpu: 0.0.40
codegen_flags: <defaults>
</compile_context>

<pallas_src>
import jax
import jax.numpy as jnp
from jax import lax
from jax.experimental import pallas as pl
from jax.experimental.pallas import tpu as pltpu

LATENT_DIM = 20
IN_X = 28 * 28              # 784 image features
N_CLASSES = 10
CLASSES_PAD = 128           # one-hot width padded to a full lane group
HIDDEN = 400
HIDDEN_PAD = 512            # 4 * 128 (zero padded, numerically inert)
HEAD_OUT_PAD = 128          # fused mu|logvar output, lane-dense
TILE_B_MAX = 2048           # batch tile ceiling (bf16 x-tile: ~3.5 MiB/buffer)


def _round_up(v, m):
    return ((v + m - 1) // m) * m


def _choose_tile(batch):
    """Pick (tile_b, padded_batch).

    * tile_b is 8-aligned and <= TILE_B_MAX.
    * For batch >= 16 the grid has >= 2 steps (keeps both v7x TCs busy; free
      on single-TC v5e/v6e).
    * Padding is bounded: < 8 extra rows per grid step (no ~2x blowups).
    """
    b8 = _round_up(batch, 8)
    if b8 < 16:
        return b8, b8
    n_steps = max(2, -(-b8 // TILE_B_MAX))          # ceil-div, at least 2
    tile_b = _round_up(-(-b8 // n_steps), 8)        # <= TILE_B_MAX by constr.
    return tile_b, n_steps * tile_b


def _encoder_kernel(x_ref, y_ref, w1x_ref, w1y_ref, b1_ref, wh_ref, bh_ref,
                    out_ref):
    """One batch tile: fc1(x, one_hot(y)) + relu + fused (mu|logvar) head."""
    x = x_ref[...]                                         # (TB, 784) bf16
    y = y_ref[...]                                         # (TB, 1)   i32
    tb = x.shape[0]
    # one_hot(y, 10) padded to 128 lanes; extra columns hit zero weight rows.
    onehot = (lax.broadcasted_iota(jnp.int32, (tb, CLASSES_PAD), 1)
              == y).astype(jnp.bfloat16)                   # (TB, 128) bf16
    # fc1 in two K-passes (image rows + class rows), f32 accumulation.
    h = jnp.dot(x, w1x_ref[...], preferred_element_type=jnp.float32)
    h = h + jnp.dot(onehot, w1y_ref[...], preferred_element_type=jnp.float32)
    h = jnp.maximum(h + b1_ref[...], 0.0)                  # (TB, 512) relu f32
    # Fused mu|logvar head: bf16 operands, f32 accumulation, lane-dense store.
    out_ref[...] = (jnp.dot(h.astype(jnp.bfloat16), wh_ref[...],
                            preferred_element_type=jnp.float32)
                    + bh_ref[...])                         # (TB, 128)


def pack_params(params):
    """Pack logical (in, out)-layout f32 params into padded bf16/f32 operands."""
    w1, b1 = params["w1"], params["b1"]            # (794, 400), (400,)
    wmu, bmu = params["wmu"], params["bmu"]        # (400, 20),  (20,)
    wlv, blv = params["wlv"], params["blv"]

    w1x = jnp.zeros((IN_X, HIDDEN_PAD), jnp.float32)
    w1x = w1x.at[:, :HIDDEN].set(w1[:IN_X])
    w1y = jnp.zeros((CLASSES_PAD, HIDDEN_PAD), jnp.float32)
    w1y = w1y.at[:N_CLASSES, :HIDDEN].set(w1[IN_X:])
    b1p = jnp.zeros((1, HIDDEN_PAD), jnp.float32).at[0, :HIDDEN].set(b1)

    wh = jnp.zeros((HIDDEN_PAD, HEAD_OUT_PAD), jnp.float32)
    wh = wh.at[:HIDDEN, :LATENT_DIM].set(wmu)
    wh = wh.at[:HIDDEN, LATENT_DIM:2 * LATENT_DIM].set(wlv)
    bh = jnp.zeros((1, HEAD_OUT_PAD), jnp.float32)
    bh = bh.at[0, :LATENT_DIM].set(bmu)
    bh = bh.at[0, LATENT_DIM:2 * LATENT_DIM].set(blv)
    return {
        "w1x": w1x.astype(jnp.bfloat16),   # MXU operands in bf16
        "w1y": w1y.astype(jnp.bfloat16),
        "wh": wh.astype(jnp.bfloat16),
        "b1": b1p,                         # biases stay f32 (added post-acc)
        "bh": bh,
    }


@jax.jit
def encoder_forward(x, y, packed):
    """x: (B, 1, 28, 28) or (B, 28, 28) float; y: (B,) int labels in [0, 10)."""
    B = x.shape[0]
    x_flat = x.reshape(B, IN_X).astype(jnp.bfloat16)       # view(-1, 784) + bf16
    y2 = y.reshape(B, 1).astype(jnp.int32)

    tile_b, B_pad = _choose_tile(B)
    if B_pad != B:
        x_flat = jnp.pad(x_flat, ((0, B_pad - B), (0, 0)))
        y2 = jnp.pad(y2, ((0, B_pad - B), (0, 0)))

    const = lambda i: (0, 0)   # weights/biases: resident, never re-fetched
    out = pl.pallas_call(
        _encoder_kernel,
        out_shape=jax.ShapeDtypeStruct((B_pad, HEAD_OUT_PAD), jnp.float32),
        grid=(B_pad // tile_b,),
        in_specs=[
            pl.BlockSpec((tile_b, IN_X), lambda i: (i, 0)),     # x batch tile
            pl.BlockSpec((tile_b, 1), lambda i: (i, 0)),        # y batch tile
            pl.BlockSpec((IN_X, HIDDEN_PAD), const),            # w1 (image rows)
            pl.BlockSpec((CLASSES_PAD, HIDDEN_PAD), const),     # w1 (class rows)
            pl.BlockSpec((1, HIDDEN_PAD), const),               # b1
            pl.BlockSpec((HIDDEN_PAD, HEAD_OUT_PAD), const),    # fused head W
            pl.BlockSpec((1, HEAD_OUT_PAD), const),             # fused head b
        ],
        out_specs=pl.BlockSpec((tile_b, HEAD_OUT_PAD), lambda i: (i, 0)),
        compiler_params=pltpu.CompilerParams(
            dimension_semantics=("parallel",),
            vmem_limit_bytes=48 * 1024 * 1024),
    )(x_flat, y2, packed["w1x"], packed["w1y"], packed["b1"],
      packed["wh"], packed["bh"])

    mu = out[:B, :LATENT_DIM]
    logvar = out[:B, LATENT_DIM:2 * LATENT_DIM]
    return mu, logvar


def init_params(key):
    """Deterministic synthetic parameters, (in_features, out_features) layout."""
    k = jax.random.split(key, 6)
    s1 = 1.0 / jnp.sqrt(jnp.float32(IN_X + N_CLASSES))
    s2 = 1.0 / jnp.sqrt(jnp.float32(HIDDEN))
    return {
        "w1": s1 * jax.random.normal(k[0], (IN_X + N_CLASSES, HIDDEN), jnp.float32),
        "b1": s1 * jax.random.normal(k[1], (HIDDEN,), jnp.float32),
        "wmu": s2 * jax.random.normal(k[2], (HIDDEN, LATENT_DIM), jnp.float32),
        "bmu": s2 * jax.random.normal(k[3], (LATENT_DIM,), jnp.float32),
        "wlv": s2 * jax.random.normal(k[4], (HIDDEN, LATENT_DIM), jnp.float32),
        "blv": s2 * jax.random.normal(k[5], (LATENT_DIM,), jnp.float32),
    }


def _reference(x, y, params):
    """Pure-JAX f32 reference (matches the PyTorch module exactly)."""
    B = x.shape[0]
    x_flat = x.reshape(B, IN_X).astype(jnp.float32)
    y_onehot = jax.nn.one_hot(y, N_CLASSES, dtype=jnp.float32)
    x_cat = jnp.concatenate([x_flat, y_onehot], axis=1)
    h = jnp.maximum(x_cat @ params["w1"] + params["b1"], 0.0)
    mu = h @ params["wmu"] + params["bmu"]
    lv = h @ params["wlv"] + params["blv"]
    return mu, lv


if __name__ == "__main__":
    key = jax.random.PRNGKey(0)
    kp, kx, ky = jax.random.split(key, 3)

    params = init_params(kp)
    packed = pack_params(params)

    B = 2  # small batch, MNIST-like NCHW input
    x = jax.random.normal(kx, (B, 1, 28, 28), jnp.float32)
    y = jax.random.randint(ky, (B,), 0, 10, jnp.int32)

    mu, logvar = encoder_forward(x, y, packed)
    jax.block_until_ready((mu, logvar))

    mu_ref, lv_ref = _reference(x, y, params)
    assert mu.shape == (B, LATENT_DIM) and logvar.shape == (B, LATENT_DIM)
    # bf16 MXU operands (f32 accumulation) -> relaxed tolerance vs f32 reference.
    assert jnp.allclose(mu, mu_ref, atol=3e-2, rtol=3e-2)
    assert jnp.allclose(logvar, lv_ref, atol=3e-2, rtol=3e-2)

    print("KERNEL_OK")
</pallas_src>

<mosaic_0001>
module attributes {stable_mosaic.version = 11 : i64} {
  func.func @_encoder_kernel(%arg0: i32, %arg1: memref<8x784xbf16, #tpu.memory_space<vmem>>, %arg2: memref<8x1xi32, #tpu.memory_space<vmem>>, %arg3: memref<784x512xbf16, #tpu.memory_space<vmem>>, %arg4: memref<128x512xbf16, #tpu.memory_space<vmem>>, %arg5: memref<1x512xf32, #tpu.memory_space<vmem>>, %arg6: memref<512x128xbf16, #tpu.memory_space<vmem>>, %arg7: memref<1x128xf32, #tpu.memory_space<vmem>>, %arg8: memref<8x128xf32, #tpu.memory_space<vmem>>) attributes {dimension_semantics = [#tpu.dimension_semantics<parallel>], iteration_bounds = array<i64: 1>, scalar_prefetch = 0 : i64, scratch_operands = 0 : i64, tpu.core_type = #tpu.core_type<tc>, window_params = [{transform_indices = @transform_0, window_bounds = array<i64: 8, 784>}, {transform_indices = @transform_1, window_bounds = array<i64: 8, 1>}, {pipeline_mode = #tpu.pipeline_mode<synchronous>, transform_indices = @transform_2, window_bounds = array<i64: 784, 512>}, {pipeline_mode = #tpu.pipeline_mode<synchronous>, transform_indices = @transform_3, window_bounds = array<i64: 128, 512>}, {pipeline_mode = #tpu.pipeline_mode<synchronous>, transform_indices = @transform_4, window_bounds = array<i64: 1, 512>}, {pipeline_mode = #tpu.pipeline_mode<synchronous>, transform_indices = @transform_5, window_bounds = array<i64: 512, 128>}, {pipeline_mode = #tpu.pipeline_mode<synchronous>, transform_indices = @transform_6, window_bounds = array<i64: 1, 128>}, {transform_indices = @transform_7, window_bounds = array<i64: 8, 128>}]} {
    %c0 = arith.constant 0 : index
    %c0_0 = arith.constant 0 : index
    %0 = vector.load %arg1[%c0, %c0_0] : memref<8x784xbf16, #tpu.memory_space<vmem>>, vector<8x784xbf16>
    %c0_1 = arith.constant 0 : index
    %c0_2 = arith.constant 0 : index
    %1 = vector.load %arg2[%c0_1, %c0_2] : memref<8x1xi32, #tpu.memory_space<vmem>>, vector<8x1xi32>
    %2 = tpu.iota {dimensions = array<i32: 1>} : vector<8x128xi32>
    %3 = vector.broadcast %1 : vector<8x1xi32> to vector<8x128xi32>
    %4 = arith.cmpi eq, %2, %3 : vector<8x128xi32>
    %5 = arith.extui %4 : vector<8x128xi1> to vector<8x128xi32>
    %6 = arith.sitofp %5 : vector<8x128xi32> to vector<8x128xf32>
    %7 = arith.truncf %6 : vector<8x128xf32> to vector<8x128xbf16>
    %c0_3 = arith.constant 0 : index
    %c0_4 = arith.constant 0 : index
    %8 = vector.load %arg3[%c0_3, %c0_4] : memref<784x512xbf16, #tpu.memory_space<vmem>>, vector<784x512xbf16>
    %cst = arith.constant dense<0.000000e+00> : vector<8x512xf32>
    %9 = tpu.matmul %0, %8, %cst {dimension_numbers = #tpu.dot_dimension_numbers<[1], [0], [0], [1], [0, 0, 1, 1], [], []>} : vector<8x784xbf16>, vector<784x512xbf16>, vector<8x512xf32> -> vector<8x512xf32>
    %c0_5 = arith.constant 0 : index
    %c0_6 = arith.constant 0 : index
    %10 = vector.load %arg4[%c0_5, %c0_6] : memref<128x512xbf16, #tpu.memory_space<vmem>>, vector<128x512xbf16>
    %cst_7 = arith.constant dense<0.000000e+00> : vector<8x512xf32>
    %11 = tpu.matmul %7, %10, %cst_7 {dimension_numbers = #tpu.dot_dimension_numbers<[1], [0], [0], [1], [0, 0, 1, 1], [], []>} : vector<8x128xbf16>, vector<128x512xbf16>, vector<8x512xf32> -> vector<8x512xf32>
    %12 = arith.addf %9, %11 : vector<8x512xf32>
    %c0_8 = arith.constant 0 : index
    %c0_9 = arith.constant 0 : index
    %13 = vector.load %arg5[%c0_8, %c0_9] : memref<1x512xf32, #tpu.memory_space<vmem>>, vector<1x512xf32>
    %14 = vector.broadcast %13 : vector<1x512xf32> to vector<8x512xf32>
    %15 = arith.addf %12, %14 : vector<8x512xf32>
    %cst_10 = arith.constant 0.000000e+00 : f32
    %16 = vector.broadcast %cst_10 : f32 to vector<8x512xf32>
    %17 = arith.maximumf %15, %16 : vector<8x512xf32>
    %18 = arith.truncf %17 : vector<8x512xf32> to vector<8x512xbf16>
    %c0_11 = arith.constant 0 : index
    %c0_12 = arith.constant 0 : index
    %19 = vector.load %arg6[%c0_11, %c0_12] : memref<512x128xbf16, #tpu.memory_space<vmem>>, vector<512x128xbf16>
    %cst_13 = arith.constant dense<0.000000e+00> : vector<8x128xf32>
    %20 = tpu.matmul %18, %19, %cst_13 {dimension_numbers = #tpu.dot_dimension_numbers<[1], [0], [0], [1], [0, 0, 1, 1], [], []>} : vector<8x512xbf16>, vector<512x128xbf16>, vector<8x128xf32> -> vector<8x128xf32>
    %c0_14 = arith.constant 0 : index
    %c0_15 = arith.constant 0 : index
    %21 = vector.load %arg7[%c0_14, %c0_15] : memref<1x128xf32, #tpu.memory_space<vmem>>, vector<1x128xf32>
    %22 = vector.broadcast %21 : vector<1x128xf32> to vector<8x128xf32>
    %23 = arith.addf %20, %22 : vector<8x128xf32>
    %c0_16 = arith.constant 0 : index
    %c0_17 = arith.constant 0 : index
    %24 = vector.load %arg8[%c0_16, %c0_17] : memref<8x128xf32, #tpu.memory_space<vmem>>, vector<8x128xf32>
    tpu.vector_store %arg8[%c0_16, %c0_17], %23 {strides = array<i32>} : memref<8x128xf32, #tpu.memory_space<vmem>>, vector<8x128xf32>,
    return
  }
  func.func @transform_0(%arg0: i32) -> (i32, i32) {
    %c0_i32 = arith.constant 0 : i32
    %c0_i32_0 = arith.constant 0 : i32
    return %arg0, %c0_i32 : i32, i32
  }
  func.func @transform_1(%arg0: i32) -> (i32, i32) {
    %c0_i32 = arith.constant 0 : i32
    %c0_i32_0 = arith.constant 0 : i32
    return %arg0, %c0_i32 : i32, i32
  }
  func.func @transform_2(%arg0: i32) -> (i32, i32) {
    %c0_i32 = arith.constant 0 : i32
    %c0_i32_0 = arith.constant 0 : i32
    %c0_i32_1 = arith.constant 0 : i32
    return %c0_i32, %c0_i32_0 : i32, i32
  }
  func.func @transform_3(%arg0: i32) -> (i32, i32) {
    %c0_i32 = arith.constant 0 : i32
    %c0_i32_0 = arith.constant 0 : i32
    %c0_i32_1 = arith.constant 0 : i32
    return %c0_i32, %c0_i32_0 : i32, i32
  }
  func.func @transform_4(%arg0: i32) -> (i32, i32) {
    %c0_i32 = arith.constant 0 : i32
    %c0_i32_0 = arith.constant 0 : i32
    %c0_i32_1 = arith.constant 0 : i32
    return %c0_i32, %c0_i32_0 : i32, i32
  }
  func.func @transform_5(%arg0: i32) -> (i32, i32) {
    %c0_i32 = arith.constant 0 : i32
    %c0_i32_0 = arith.constant 0 : i32
    %c0_i32_1 = arith.constant 0 : i32
    return %c0_i32, %c0_i32_0 : i32, i32
  }
  func.func @transform_6(%arg0: i32) -> (i32, i32) {
    %c0_i32 = arith.constant 0 : i32
    %c0_i32_0 = arith.constant 0 : i32
    %c0_i32_1 = arith.constant 0 : i32
    return %c0_i32, %c0_i32_0 : i32, i32
  }
  func.func @transform_7(%arg0: i32) -> (i32, i32) {
    %c0_i32 = arith.constant 0 : i32
    %c0_i32_0 = arith.constant 0 : i32
    return %arg0, %c0_i32 : i32, i32
  }
}

</mosaic_0001>

<llo_original>
// kernel: encoder_forward.1
$region0: #{encoder_forward.1}
  #allocation0 [shape = 'u32[]', space=smem, size = 0x4, offset = 0x4, fixed_abs, tag = 'smem constant byte address 0x4 - core index']
  #allocation1 [shape = 'u32[144,128]{1,0:T(1,128)}', space=vmem, size = 0x12000, scoped, tag = 'internal scratch']
  %s0 = inlined_call_operand.vmem [shape: bf16[8,784], index: 0, kind: input, shape index: {}]
  %s1 = inlined_call_operand.vmem [shape: s32[8,1], index: 1, kind: input, shape index: {}]
  %s2 = inlined_call_operand.hbm [shape: bf16[784,512], index: 2, kind: input, shape index: {}]
  %s3 = inlined_call_operand.hbm [shape: bf16[128,512], index: 3, kind: input, shape index: {}]
  %s4 = inlined_call_operand.vmem [shape: f32[1,512], index: 4, kind: input, shape index: {}]
  %s5 = inlined_call_operand.hbm [shape: bf16[512,128], index: 5, kind: input, shape index: {}]
  %s6 = inlined_call_operand.vmem [shape: f32[1,128], index: 6, kind: input, shape index: {}]
  %s7 = inlined_call_operand.vmem [shape: f32[8,128], index: 7, kind: output, shape index: {}]
  %s8 = sld [smem:[#allocation0]]
  $region50: #{encoder_forward.1} parent=0
    _
  %s10 = ssub.s32 1, %s8
  %s11 = scalar_select 0, %s10, %s8
  $region1: #{encoder_forward.1} parent=0
    #allocation2 [shape = 'u8[802816]{0}', space=vmem, size = 0xc4000, scoped, tag = 'input window, operand 2, single buffered']
    #allocation3 [shape = 's32[1]{0}', space=sflag, size = 0x4, scoped, tag = 'scoped memory for encoder_forward.1']
    #allocation4 [shape = 'u8[131072]{0}', space=vmem, size = 0x20000, scoped, tag = 'input window, operand 3, single buffered']
    #allocation5 [shape = 's32[1]{0}', space=sflag, size = 0x4, scoped, tag = 'scoped memory for encoder_forward.1']
    #allocation6 [shape = 'u8[131072]{0}', space=vmem, size = 0x20000, scoped, tag = 'input window, operand 5, single buffered']
    %12 = vsyncpa [#allocation3], 0
    %13 = vsyncpa [#allocation5], 0
    // Predicated region
    $region2: #{encoder_forward.1} parent=1 // pred_check
      _
    $region3: #{encoder_forward.1} parent=1 // pred_check_branch
      %15 = sbr.rel (0) target = $region5
    $region4: #{encoder_forward.1} parent=1 // pred_region
      _
    $region5: #{encoder_forward.1} parent=1 // pred_fallthru
      _
    // Predicated region
    $region6: #{encoder_forward.1} parent=1 // pred_check
      _
    $region7: #{encoder_forward.1} parent=1 // pred_check_branch
      %17 = sbr.rel (0) target = $region9
    $region8: #{encoder_forward.1} parent=1 // pred_region
      _
    $region9: #{encoder_forward.1} parent=1 // pred_fallthru
      _
    // Predicated region
    $region10: #{encoder_forward.1} parent=1 // pred_check
      _
    $region11: #{encoder_forward.1} parent=1 // pred_check_branch
      %19 = sbr.rel (0) target = $region13
    $region12: #{encoder_forward.1} parent=1 // pred_region
      %s21 = ssub.s32 25088, 25088
      %22 = vsyncadd [#allocation3], %s21
      %s23 = sshll.u32 [#allocation2], 4
      %s24 = int_to_ptr.vmem [resolvable:$true] %s23
      %29 = dma.hbm_to_vmem [thread:$0]  %s2, 25088, %s24, [#allocation3], 256, 256, 16
    $region13: #{encoder_forward.1} parent=1 // pred_fallthru
      _
    // Predicated region
    $region14: #{encoder_forward.1} parent=1 // pred_check
      _
    $region15: #{encoder_forward.1} parent=1 // pred_check_branch
      %31 = sbr.rel (0) target = $region17
    $region16: #{encoder_forward.1} parent=1 // pred_region
      %s33 = ssub.s32 4096, 4096
      %34 = vsyncadd [#allocation5], %s33
      %s35 = sshll.u32 [#allocation4], 4
      %s36 = int_to_ptr.vmem [resolvable:$true] %s35
      %41 = dma.hbm_to_vmem [thread:$0]  %s3, 4096, %s36, [#allocation5], 256, 256, 16
    $region17: #{encoder_forward.1} parent=1 // pred_fallthru
      _
    // Predicated region
    $region18: #{encoder_forward.1} parent=1 // pred_check
      _
    $region19: #{encoder_forward.1} parent=1 // pred_check_branch
      %43 = sbr.rel (0) target = $region21
    $region20: #{encoder_forward.1} parent=1 // pred_region
      _
    $region21: #{encoder_forward.1} parent=1 // pred_fallthru
      _
    // Predicated region
    $region22: #{encoder_forward.1} parent=1 // pred_check
      _
    $region23: #{encoder_forward.1} parent=1 // pred_check_branch
      %45 = sbr.rel (0) target = $region25
    $region24: #{encoder_forward.1} parent=1 // pred_region
      %s47 = ssub.s32 4096, 4096
      %48 = vsyncadd [#allocation5], %s47
      %s49 = sshll.u32 [#allocation6], 4
      %s50 = int_to_ptr.vmem [resolvable:$true] %s49
      %55 = dma.hbm_to_vmem [thread:$0]  %s5, 4096, %s50, [#allocation5], 64, 64, 4
    $region25: #{encoder_forward.1} parent=1 // pred_fallthru
      _
    // Predicated region
    $region26: #{encoder_forward.1} parent=1 // pred_check
      _
    $region27: #{encoder_forward.1} parent=1 // pred_check_branch
      %57 = sbr.rel (0) target = $region29
    $region28: #{encoder_forward.1} parent=1 // pred_region
      _
    $region29: #{encoder_forward.1} parent=1 // pred_fallthru
      _
    // Predicated region
    $region30: #{encoder_forward.1} parent=1 // pred_check
      _
    $region31: #{encoder_forward.1} parent=1 // pred_check_branch
      %59 = sbr.rel (0) target = $region33
    $region32: #{encoder_forward.1} parent=1 // pred_region
      %60 = dma.done [#allocation3], 25088
    $region33: #{encoder_forward.1} parent=1 // pred_fallthru
      _
    // Predicated region
    $region34: #{encoder_forward.1} parent=1 // pred_check
      _
    $region35: #{encoder_forward.1} parent=1 // pred_check_branch
      %62 = sbr.rel (0) target = $region37
    $region36: #{encoder_forward.1} parent=1 // pred_region
      %63 = dma.done [#allocation5], 4096
    $region37: #{encoder_forward.1} parent=1 // pred_fallthru
      _
    // Predicated region
    $region38: #{encoder_forward.1} parent=1 // pred_check
      _
    $region39: #{encoder_forward.1} parent=1 // pred_check_branch
      %65 = sbr.rel (0) target = $region41
    $region40: #{encoder_forward.1} parent=1 // pred_region
      %66 = dma.done [#allocation5], 4096
    $region41: #{encoder_forward.1} parent=1 // pred_fallthru
      _
    %v68 = vld [vmem:[%s0] sm:$0xff]
    %v69 = vld [vmem:[%s0 + $0x8] sm:$0xff]
    %v70 = vld [vmem:[%s0 + $0x10] sm:$0xff]
    %v71 = vld [vmem:[%s0 + $0x18] sm:$0xf]
    %v72 = vld [vmem:[%s1] sm:$0xff]
    %v73 = vlaneseq
    %v74 = vand.u32 %v73, 127
    %75 = vset.pattern.permute.xlu0 0
    %76 = vperm.xlu0 %75, %v72
    %v77 = vpop.permute.xlu0 %76
    %vm78 = vcmp.eq.s32.totalorder %v74, %v77
    %v79 = vsel %vm78, 1, 0
    %v80 = vcvt.s32.f32 %v79
    %v81 = vpack.c.bf16 %v80, %v80
    %v82 = vld [vmem:[#allocation2] sm:$0xff]
    %v83 = vld [vmem:[#allocation2 + $0x8] sm:$0xff]
    %v84 = vld [vmem:[#allocation2 + $0x10] sm:$0xff]
    %v85 = vld [vmem:[#allocation2 + $0x18] sm:$0xff]
    %v86 = vld [vmem:[#allocation2 + $0x20] sm:$0xff]
    %v87 = vld [vmem:[#allocation2 + $0x28] sm:$0xff]
    %v88 = vld [vmem:[#allocation2 + $0x30] sm:$0xff]
    %v89 = vld [vmem:[#allocation2 + $0x38] sm:$0xff]
    %v90 = vld [vmem:[#allocation2 + $0x40] sm:$0xff]
    %v91 = vld [vmem:[#allocation2 + $0x48] sm:$0xff]
    %v92 = vld [vmem:[#allocation2 + $0x50] sm:$0xff]
    %v93 = vld [vmem:[#allocation2 + $0x58] sm:$0xff]
    %v94 = vld [vmem:[#allocation2 + $0x60] sm:$0xff]
    %v95 = vld [vmem:[#allocation2 + $0x68] sm:$0xff]
    %v96 = vld [vmem:[#allocation2 + $0x70] sm:$0xff]
    %v97 = vld [vmem:[#allocation2 + $0x78] sm:$0xff]
    %v98 = vld [vmem:[#allocation2 + $0x80] sm:$0xff]
    %v99 = vld [vmem:[#allocation2 + $0x88] sm:$0xff]
    %v100 = vld [vmem:[#allocation2 + $0x90] sm:$0xff]
    %v101 = vld [vmem:[#allocation2 + $0x98] sm:$0xff]
    %v102 = vld [vmem:[#allocation2 + $0xa0] sm:$0xff]
    %v103 = vld [vmem:[#allocation2 + $0xa8] sm:$0xff]
    %v104 = vld [vmem:[#allocation2 + $0xb0] sm:$0xff]
    %v105 = vld [vmem:[#allocation2 + $0xb8] sm:$0xff]
    %v106 = vld [vmem:[#allocation2 + $0xc0] sm:$0xff]
    %v107 = vld [vmem:[#allocation2 + $0xc8] sm:$0xff]
    %v108 = vld [vmem:[#allocation2 + $0xd0] sm:$0xff]
    %v109 = vld [vmem:[#allocation2 + $0xd8] sm:$0xff]
    %v110 = vld [vmem:[#allocation2 + $0xe0] sm:$0xff]
    %v111 = vld [vmem:[#allocation2 + $0xe8] sm:$0xff]
    %v112 = vld [vmem:[#allocation2 + $0xf0] sm:$0xff]
    %v113 = vld [vmem:[#allocation2 + $0xf8] sm:$0xff]
    %v114 = vld [vmem:[#allocation2 + $0x100] sm:$0xff]
    %v115 = vld [vmem:[#allocation2 + $0x108] sm:$0xff]
    %v116 = vld [vmem:[#allocation2 + $0x110] sm:$0xff]
    %v117 = vld [vmem:[#allocation2 + $0x118] sm:$0xff]
    %v118 = vld [vmem:[#allocation2 + $0x120] sm:$0xff]
    %v119 = vld [vmem:[#allocation2 + $0x128] sm:$0xff]
    %v120 = vld [vmem:[#allocation2 + $0x130] sm:$0xff]
    %v121 = vld [vmem:[#allocation2 + $0x138] sm:$0xff]
    %v122 = vld [vmem:[#allocation2 + $0x140] sm:$0xff]
    %v123 = vld [vmem:[#allocation2 + $0x148] sm:$0xff]
    %v124 = vld [vmem:[#allocation2 + $0x150] sm:$0xff]
    %v125 = vld [vmem:[#allocation2 + $0x158] sm:$0xff]
    %v126 = vld [vmem:[#allocation2 + $0x160] sm:$0xff]
    %v127 = vld [vmem:[#allocation2 + $0x168] sm:$0xff]
    %v128 = vld [vmem:[#allocation2 + $0x170] sm:$0xff]
    %v129 = vld [vmem:[#allocation2 + $0x178] sm:$0xff]
    %v130 = vld [vmem:[#allocation2 + $0x180] sm:$0xff]
    %v131 = vld [vmem:[#allocation2 + $0x188] sm:$0xff]
    %v132 = vld [vmem:[#allocation2 + $0x190] sm:$0xff]
    %v133 = vld [vmem:[#allocation2 + $0x198] sm:$0xff]
    %v134 = vld [vmem:[#allocation2 + $0x1a0] sm:$0xff]
    %v135 = vld [vmem:[#allocation2 + $0x1a8] sm:$0xff]
    %v136 = vld [vmem:[#allocation2 + $0x1b0] sm:$0xff]
    %v137 = vld [vmem:[#allocation2 + $0x1b8] sm:$0xff]
    %v138 = vld [vmem:[#allocation2 + $0x1c0] sm:$0xff]
    %v139 = vld [vmem:[#allocation2 + $0x1c8] sm:$0xff]
    %v140 = vld [vmem:[#allocation2 + $0x1d0] sm:$0xff]
    %v141 = vld [vmem:[#allocation2 + $0x1d8] sm:$0xff]
    %v142 = vld [vmem:[#allocation2 + $0x1e0] sm:$0xff]
    %v143 = vld [vmem:[#allocation2 + $0x1e8] sm:$0xff]
    %v144 = vld [vmem:[#allocation2 + $0x1f0] sm:$0xff]
    %v145 = vld [vmem:[#allocation2 + $0x1f8] sm:$0xff]
    %v146 = vld [vmem:[#allocation2 + $0x200] sm:$0xff]
    %v147 = vld [vmem:[#allocation2 + $0x208] sm:$0xff]
    %v148 = vld [vmem:[#allocation2 + $0x210] sm:$0xff]
    %v149 = vld [vmem:[#allocation2 + $0x218] sm:$0xff]
    %v150 = vld [vmem:[#allocation2 + $0x220] sm:$0xff]
    %v151 = vld [vmem:[#allocation2 + $0x228] sm:$0xff]
    %v152 = vld [vmem:[#allocation2 + $0x230] sm:$0xff]
    %v153 = vld [vmem:[#allocation2 + $0x238] sm:$0xff]
    %v154 = vld [vmem:[#allocation2 + $0x240] sm:$0xff]
    %v155 = vld [vmem:[#allocation2 + $0x248] sm:$0xff]
    %v156 = vld [vmem:[#allocation2 + $0x250] sm:$0xff]
    %v157 = vld [vmem:[#allocation2 + $0x258] sm:$0xff]
    %v158 = vld [vmem:[#allocation2 + $0x260] sm:$0xff]
    %v159 = vld [vmem:[#allocation2 + $0x268] sm:$0xff]
    %v160 = vld [vmem:[#allocation2 + $0x270] sm:$0xff]
    %v161 = vld [vmem:[#allocation2 + $0x278] sm:$0xff]
    %v162 = vld [vmem:[#allocation2 + $0x280] sm:$0xff]
    %v163 = vld [vmem:[#allocation2 + $0x288] sm:$0xff]
    %v164 = vld [vmem:[#allocation2 + $0x290] sm:$0xff]
    %v165 = vld [vmem:[#allocation2 + $0x298] sm:$0xff]
    %v166 = vld [vmem:[#allocation2 + $0x2a0] sm:$0xff]
    %v167 = vld [vmem:[#allocation2 + $0x2a8] sm:$0xff]
    %v168 = vld [vmem:[#allocation2 + $0x2b0] sm:$0xff]
    %v169 = vld [vmem:[#allocation2 + $0x2b8] sm:$0xff]
    %v170 = vld [vmem:[#allocation2 + $0x2c0] sm:$0xff]
    %v171 = vld [vmem:[#allocation2 + $0x2c8] sm:$0xff]
    %v172 = vld [vmem:[#allocation2 + $0x2d0] sm:$0xff]
    %v173 = vld [vmem:[#allocation2 + $0x2d8] sm:$0xff]
    %v174 = vld [vmem:[#allocation2 + $0x2e0] sm:$0xff]
    %v175 = vld [vmem:[#allocation2 + $0x2e8] sm:$0xff]
    %v176 = vld [vmem:[#allocation2 + $0x2f0] sm:$0xff]
    %v177 = vld [vmem:[#allocation2 + $0x2f8] sm:$0xff]
    %v178 = vld [vmem:[#allocation2 + $0x300] sm:$0xff]
    %v179 = vld [vmem:[#allocation2 + $0x308] sm:$0xff]
    %v180 = vld [vmem:[#allocation2 + $0x310] sm:$0xff]
    %v181 = vld [vmem:[#allocation2 + $0x318] sm:$0xff]
    %v182 = vld [vmem:[#allocation2 + $0x320] sm:$0xff]
    %v183 = vld [vmem:[#allocation2 + $0x328] sm:$0xff]
    %v184 = vld [vmem:[#allocation2 + $0x330] sm:$0xff]
    %v185 = vld [vmem:[#allocation2 + $0x338] sm:$0xff]
    %v186 = vld [vmem:[#allocation2 + $0x340] sm:$0xff]
    %v187 = vld [vmem:[#allocation2 + $0x348] sm:$0xff]
    %v188 = vld [vmem:[#allocation2 + $0x350] sm:$0xff]
    %v189 = vld [vmem:[#allocation2 + $0x358] sm:$0xff]
    %v190 = vld [vmem:[#allocation2 + $0x360] sm:$0xff]
    %v191 = vld [vmem:[#allocation2 + $0x368] sm:$0xff]
    %v192 = vld [vmem:[#allocation2 + $0x370] sm:$0xff]
    %v193 = vld [vmem:[#allocation2 + $0x378] sm:$0xff]
    %v194 = vld [vmem:[#allocation2 + $0x380] sm:$0xff]
    %v195 = vld [vmem:[#allocation2 + $0x388] sm:$0xff]
    %v196 = vld [vmem:[#allocation2 + $0x390] sm:$0xff]
    %v197 = vld [vmem:[#allocation2 + $0x398] sm:$0xff]
    %v198 = vld [vmem:[#allocation2 + $0x3a0] sm:$0xff]
    %v199 = vld [vmem:[#allocation2 + $0x3a8] sm:$0xff]
    %v200 = vld [vmem:[#allocation2 + $0x3b0] sm:$0xff]
    %v201 = vld [vmem:[#allocation2 + $0x3b8] sm:$0xff]
    %v202 = vld [vmem:[#allocation2 + $0x3c0] sm:$0xff]
    %v203 = vld [vmem:[#allocation2 + $0x3c8] sm:$0xff]
    %v204 = vld [vmem:[#allocation2 + $0x3d0] sm:$0xff]
    %v205 = vld [vmem:[#allocation2 + $0x3d8] sm:$0xff]
    %v206 = vld [vmem:[#allocation2 + $0x3e0] sm:$0xff]
    %v207 = vld [vmem:[#allocation2 + $0x3e8] sm:$0xff]
    %v208 = vld [vmem:[#allocation2 + $0x3f0] sm:$0xff]
    %v209 = vld [vmem:[#allocation2 + $0x3f8] sm:$0xff]
    %v210 = vld [vmem:[#allocation2 + $0x400] sm:$0xff]
    %v211 = vld [vmem:[#allocation2 + $0x408] sm:$0xff]
    %v212 = vld [vmem:[#allocation2 + $0x410] sm:$0xff]
    %v213 = vld [vmem:[#allocation2 + $0x418] sm:$0xff]
    %v214 = vld [vmem:[#allocation2 + $0x420] sm:$0xff]
    %v215 = vld [vmem:[#allocation2 + $0x428] sm:$0xff]
    %v216 = vld [vmem:[#allocation2 + $0x430] sm:$0xff]
    %v217 = vld [vmem:[#allocation2 + $0x438] sm:$0xff]
    %v218 = vld [vmem:[#allocation2 + $0x440] sm:$0xff]
    %v219 = vld [vmem:[#allocation2 + $0x448] sm:$0xff]
    %v220 = vld [vmem:[#allocation2 + $0x450] sm:$0xff]
    %v221 = vld [vmem:[#allocation2 + $0x458] sm:$0xff]
    %v222 = vld [vmem:[#allocation2 + $0x460] sm:$0xff]
    %v223 = vld [vmem:[#allocation2 + $0x468] sm:$0xff]
    %v224 = vld [vmem:[#allocation2 + $0x470] sm:$0xff]
    %v225 = vld [vmem:[#allocation2 + $0x478] sm:$0xff]
    %v226 = vld [vmem:[#allocation2 + $0x480] sm:$0xff]
    %v227 = vld [vmem:[#allocation2 + $0x488] sm:$0xff]
    %v228 = vld [vmem:[#allocation2 + $0x490] sm:$0xff]
    %v229 = vld [vmem:[#allocation2 + $0x498] sm:$0xff]
    %v230 = vld [vmem:[#allocation2 + $0x4a0] sm:$0xff]
    %v231 = vld [vmem:[#allocation2 + $0x4a8] sm:$0xff]
    %v232 = vld [vmem:[#allocation2 + $0x4b0] sm:$0xff]
    %v233 = vld [vmem:[#allocation2 + $0x4b8] sm:$0xff]
    %v234 = vld [vmem:[#allocation2 + $0x4c0] sm:$0xff]
    %v235 = vld [vmem:[#allocation2 + $0x4c8] sm:$0xff]
    %v236 = vld [vmem:[#allocation2 + $0x4d0] sm:$0xff]
    %v237 = vld [vmem:[#allocation2 + $0x4d8] sm:$0xff]
    %v238 = vld [vmem:[#allocation2 + $0x4e0] sm:$0xff]
    %v239 = vld [vmem:[#allocation2 + $0x4e8] sm:$0xff]
    %v240 = vld [vmem:[#allocation2 + $0x4f0] sm:$0xff]
    %v241 = vld [vmem:[#allocation2 + $0x4f8] sm:$0xff]
    %v242 = vld [vmem:[#allocation2 + $0x500] sm:$0xff]
    %v243 = vld [vmem:[#allocation2 + $0x508] sm:$0xff]
    %v244 = vld [vmem:[#allocation2 + $0x510] sm:$0xff]
    %v245 = vld [vmem:[#allocation2 + $0x518] sm:$0xff]
    %v246 = vld [vmem:[#allocation2 + $0x520] sm:$0xff]
    %v247 = vld [vmem:[#allocation2 + $0x528] sm:$0xff]
    %v248 = vld [vmem:[#allocation2 + $0x530] sm:$0xff]
    %v249 = vld [vmem:[#allocation2 + $0x538] sm:$0xff]
    %v250 = vld [vmem:[#allocation2 + $0x540] sm:$0xff]
    %v251 = vld [vmem:[#allocation2 + $0x548] sm:$0xff]
    %v252 = vld [vmem:[#allocation2 + $0x550] sm:$0xff]
    %v253 = vld [vmem:[#allocation2 + $0x558] sm:$0xff]
    %v254 = vld [vmem:[#allocation2 + $0x560] sm:$0xff]
    %v255 = vld [vmem:[#allocation2 + $0x568] sm:$0xff]
    %v256 = vld [vmem:[#allocation2 + $0x570] sm:$0xff]
    %v257 = vld [vmem:[#allocation2 + $0x578] sm:$0xff]
    %v258 = vld [vmem:[#allocation2 + $0x580] sm:$0xff]
    %v259 = vld [vmem:[#allocation2 + $0x588] sm:$0xff]
    %v260 = vld [vmem:[#allocation2 + $0x590] sm:$0xff]
    %v261 = vld [vmem:[#allocation2 + $0x598] sm:$0xff]
    %v262 = vld [vmem:[#allocation2 + $0x5a0] sm:$0xff]
    %v263 = vld [vmem:[#allocation2 + $0x5a8] sm:$0xff]
    %v264 = vld [vmem:[#allocation2 + $0x5b0] sm:$0xff]
    %v265 = vld [vmem:[#allocation2 + $0x5b8] sm:$0xff]
    %v266 = vld [vmem:[#allocation2 + $0x5c0] sm:$0xff]
    %v267 = vld [vmem:[#allocation2 + $0x5c8] sm:$0xff]
    %v268 = vld [vmem:[#allocation2 + $0x5d0] sm:$0xff]
    %v269 = vld [vmem:[#allocation2 + $0x5d8] sm:$0xff]
    %v270 = vld [vmem:[#allocation2 + $0x5e0] sm:$0xff]
    %v271 = vld [vmem:[#allocation2 + $0x5e8] sm:$0xff]
    %v272 = vld [vmem:[#allocation2 + $0x5f0] sm:$0xff]
    %v273 = vld [vmem:[#allocation2 + $0x5f8] sm:$0xff]
    %v274 = vld [vmem:[#allocation2 + $0x600] sm:$0xff]
    %v275 = vld [vmem:[#allocation2 + $0x608] sm:$0xff]
    %v276 = vld [vmem:[#allocation2 + $0x610] sm:$0xff]
    %v277 = vld [vmem:[#allocation2 + $0x618] sm:$0xff]
    %v278 = vld [vmem:[#allocation4] sm:$0xff]
    %v279 = vld [vmem:[#allocation4 + $0x8] sm:$0xff]
    %v280 = vld [vmem:[#allocation4 + $0x10] sm:$0xff]
    %v281 = vld [vmem:[#allocation4 + $0x18] sm:$0xff]
    %v282 = vld [vmem:[#allocation4 + $0x20] sm:$0xff]
    %v283 = vld [vmem:[#allocation4 + $0x28] sm:$0xff]
    %v284 = vld [vmem:[#allocation4 + $0x30] sm:$0xff]
    %v285 = vld [vmem:[#allocation4 + $0x38] sm:$0xff]
    %v286 = vld [vmem:[#allocation4 + $0x40] sm:$0xff]
    %v287 = vld [vmem:[#allocation4 + $0x48] sm:$0xff]
    %v288 = vld [vmem:[#allocation4 + $0x50] sm:$0xff]
    %v289 = vld [vmem:[#allocation4 + $0x58] sm:$0xff]
    %v290 = vld [vmem:[#allocation4 + $0x60] sm:$0xff]
    %v291 = vld [vmem:[#allocation4 + $0x68] sm:$0xff]
    %v292 = vld [vmem:[#allocation4 + $0x70] sm:$0xff]
    %v293 = vld [vmem:[#allocation4 + $0x78] sm:$0xff]
    %v294 = vld [vmem:[#allocation4 + $0x80] sm:$0xff]
    %v295 = vld [vmem:[#allocation4 + $0x88] sm:$0xff]
    %v296 = vld [vmem:[#allocation4 + $0x90] sm:$0xff]
    %v297 = vld [vmem:[#allocation4 + $0x98] sm:$0xff]
    %v298 = vld [vmem:[#allocation4 + $0xa0] sm:$0xff]
    %v299 = vld [vmem:[#allocation4 + $0xa8] sm:$0xff]
    %v300 = vld [vmem:[#allocation4 + $0xb0] sm:$0xff]
    %v301 = vld [vmem:[#allocation4 + $0xb8] sm:$0xff]
    %v302 = vld [vmem:[#allocation4 + $0xc0] sm:$0xff]
    %v303 = vld [vmem:[#allocation4 + $0xc8] sm:$0xff]
    %v304 = vld [vmem:[#allocation4 + $0xd0] sm:$0xff]
    %v305 = vld [vmem:[#allocation4 + $0xd8] sm:$0xff]
    %v306 = vld [vmem:[#allocation4 + $0xe0] sm:$0xff]
    %v307 = vld [vmem:[#allocation4 + $0xe8] sm:$0xff]
    %v308 = vld [vmem:[#allocation4 + $0xf0] sm:$0xff]
    %v309 = vld [vmem:[#allocation4 + $0xf8] sm:$0xff]
    %v342 = vunpack.c.l.b16 %v278
    %v343 = vunpack.c.h.b16 %v278
    %v344 = vunpack.c.l.b16 %v279
    %v345 = vunpack.c.h.b16 %v279
    %v346 = vunpack.c.l.b16 %v280
    %v347 = vunpack.c.h.b16 %v280
    %v348 = vunpack.c.l.b16 %v281
    %v349 = vunpack.c.h.b16 %v281
    %v350 = vunpack.c.l.b16 %v282
    %v351 = vunpack.c.h.b16 %v282
    %v352 = vunpack.c.l.b16 %v283
    %v353 = vunpack.c.h.b16 %v283
    %v354 = vunpack.c.l.b16 %v284
    %v355 = vunpack.c.h.b16 %v284
    %v356 = vunpack.c.l.b16 %v285
    %v357 = vunpack.c.h.b16 %v285
    %v358 = vunpack.c.l.b16 %v286
    %v359 = vunpack.c.h.b16 %v286
    %v360 = vunpack.c.l.b16 %v287
    %v361 = vunpack.c.h.b16 %v287
    %v362 = vunpack.c.l.b16 %v288
    %v363 = vunpack.c.h.b16 %v288
    %v364 = vunpack.c.l.b16 %v289
    %v365 = vunpack.c.h.b16 %v289
    %v366 = vunpack.c.l.b16 %v290
    %v367 = vunpack.c.h.b16 %v290
    %v368 = vunpack.c.l.b16 %v291
    %v369 = vunpack.c.h.b16 %v291
    %v370 = vunpack.c.l.b16 %v292
    %v371 = vunpack.c.h.b16 %v292
    %v372 = vunpack.c.l.b16 %v293
    %v373 = vunpack.c.h.b16 %v293
    %v374 = vunpack.c.l.b16 %v294
    %v375 = vunpack.c.h.b16 %v294
    %v376 = vunpack.c.l.b16 %v295
    %v377 = vunpack.c.h.b16 %v295
    %v378 = vunpack.c.l.b16 %v296
    %v379 = vunpack.c.h.b16 %v296
    %v380 = vunpack.c.l.b16 %v297
    %v381 = vunpack.c.h.b16 %v297
    %v382 = vunpack.c.l.b16 %v298
    %v383 = vunpack.c.h.b16 %v298
    %v384 = vunpack.c.l.b16 %v299
    %v385 = vunpack.c.h.b16 %v299
    %v386 = vunpack.c.l.b16 %v300
    %v387 = vunpack.c.h.b16 %v300
    %v388 = vunpack.c.l.b16 %v301
    %v389 = vunpack.c.h.b16 %v301
    %v390 = vunpack.c.l.b16 %v302
    %v391 = vunpack.c.h.b16 %v302
    %v392 = vunpack.c.l.b16 %v303
    %v393 = vunpack.c.h.b16 %v303
    %v394 = vunpack.c.l.b16 %v304
    %v395 = vunpack.c.h.b16 %v304
    %v396 = vunpack.c.l.b16 %v305
    %v397 = vunpack.c.h.b16 %v305
    %v398 = vunpack.c.l.b16 %v306
    %v399 = vunpack.c.h.b16 %v306
    %v400 = vunpack.c.l.b16 %v307
    %v401 = vunpack.c.h.b16 %v307
    %v402 = vunpack.c.l.b16 %v308
    %v403 = vunpack.c.h.b16 %v308
    %v404 = vunpack.c.l.b16 %v309
    %v405 = vunpack.c.h.b16 %v309
    %v406 = vpack.c.b16 %v346, %v342
    %v407 = vpack.c.b16 %v347, %v343
    %v408 = vpack.c.b16 %v348, %v344
    %v409 = vpack.c.b16 %v349, %v345
    %v410 = vpack.c.b16 %v354, %v350
    %v411 = vpack.c.b16 %v355, %v351
    %v412 = vpack.c.b16 %v356, %v352
    %v413 = vpack.c.b16 %v357, %v353
    %v414 = vpack.c.b16 %v362, %v358
    %v415 = vpack.c.b16 %v363, %v359
    %v416 = vpack.c.b16 %v364, %v360
    %v417 = vpack.c.b16 %v365, %v361
    %v418 = vpack.c.b16 %v370, %v366
    %v419 = vpack.c.b16 %v371, %v367
    %v420 = vpack.c.b16 %v372, %v368
    %v421 = vpack.c.b16 %v373, %v369
    %v422 = vpack.c.b16 %v378, %v374
    %v423 = vpack.c.b16 %v379, %v375
    %v424 = vpack.c.b16 %v380, %v376
    %v425 = vpack.c.b16 %v381, %v377
    %v426 = vpack.c.b16 %v386, %v382
    %v427 = vpack.c.b16 %v387, %v383
    %v428 = vpack.c.b16 %v388, %v384
    %v429 = vpack.c.b16 %v389, %v385
    %v430 = vpack.c.b16 %v394, %v390
    %v431 = vpack.c.b16 %v395, %v391
    %v432 = vpack.c.b16 %v396, %v392
    %v433 = vpack.c.b16 %v397, %v393
    %v434 = vpack.c.b16 %v402, %v398
    %v435 = vpack.c.b16 %v403, %v399
    %v436 = vpack.c.b16 %v404, %v400
    %v437 = vpack.c.b16 %v405, %v401
    %470 = vmatprep.subr.bf16.mxu0 %v407
    %471 = vmatpush1.bf16.msra.mxu0 %v406
    %472 = vmatprep.subr.bf16.mxu0 %v411
    %473 = vmatpush1.bf16.msra.mxu0 %v410
    %474 = vmatprep.subr.bf16.mxu0 %v415
    %475 = vmatpush1.bf16.msra.mxu0 %v414
    %476 = vmatprep.subr.bf16.mxu0 %v419
    %477 = vmatpush1.bf16.msra.mxu0 %v418
    %478 = vmatprep.subr.bf16.mxu0 %v423
    %479 = vmatpush1.bf16.msra.mxu0 %v422
    %480 = vmatprep.subr.bf16.mxu0 %v427
    %481 = vmatpush1.bf16.msra.mxu0 %v426
    %482 = vmatprep.subr.bf16.mxu0 %v431
    %483 = vmatpush1.bf16.msra.mxu0 %v430
    %484 = vmatprep.subr.bf16.mxu0 %v435
    %485 = vmatpush1.bf16.msra.mxu0 %v434
    %486 = vmatprep.subr.bf16.mxu0 0
    %487 = vmatpush1.bf16.msra.mxu0 0
    %488 = vmatprep.subr.bf16.mxu0 0
    %489 = vmatpush1.bf16.msra.mxu0 0
    %490 = vmatprep.subr.bf16.mxu0 0
    %491 = vmatpush1.bf16.msra.mxu0 0
    %492 = vmatprep.subr.bf16.mxu0 0
    %493 = vmatpush1.bf16.msra.mxu0 0
    %494 = vmatprep.subr.bf16.mxu0 0
    %495 = vmatpush1.bf16.msra.mxu0 0
    %496 = vmatprep.subr.bf16.mxu0 0
    %497 = vmatpush1.bf16.msra.mxu0 0
    %498 = vmatprep.subr.bf16.mxu0 0
    %499 = vmatpush1.bf16.msra.mxu0 0
    %500 = vmatprep.subr.bf16.mxu0 0
    %501 = vmatpush1.bf16.msra.mxu0 0
    %502 = vmatprep.mubr.bf16.mxu0 0
    %503 = vmatmul.mubr.bf16.gmra.mrb[0].mxu0 %v81
    %v504 = vpop.f32.mrb[0].mxu0
    %v505 = vadd.f32 0.0, %v504
    %v506 = vpop.f32.mrb[0].mxu0
    %v507 = vadd.f32 0.0, %v506
    %v508 = vpop.f32.mrb[0].mxu0
    %v509 = vpop.f32.mrb[0].mxu0
    %510 = vdwg.mxu0
    %511 = vmatprep.subr.bf16.mxu0 %v409
    %512 = vmatpush1.bf16.msra.mxu0 %v408
    %513 = vmatprep.subr.bf16.mxu0 %v413
    %514 = vmatpush1.bf16.msra.mxu0 %v412
    %515 = vmatprep.subr.bf16.mxu0 %v417
    %516 = vmatpush1.bf16.msra.mxu0 %v416
    %517 = vmatprep.subr.bf16.mxu0 %v421
    %518 = vmatpush1.bf16.msra.mxu0 %v420
    %519 = vmatprep.subr.bf16.mxu0 %v425
    %520 = vmatpush1.bf16.msra.mxu0 %v424
    %521 = vmatprep.subr.bf16.mxu0 %v429
    %522 = vmatpush1.bf16.msra.mxu0 %v428
    %523 = vmatprep.subr.bf16.mxu0 %v433
    %524 = vmatpush1.bf16.msra.mxu0 %v432
    %525 = vmatprep.subr.bf16.mxu0 %v437
    %526 = vmatpush1.bf16.msra.mxu0 %v436
    %527 = vmatprep.subr.bf16.mxu0 0
    %528 = vmatpush1.bf16.msra.mxu0 0
    %529 = vmatprep.subr.bf16.mxu0 0
    %530 = vmatpush1.bf16.msra.mxu0 0
    %531 = vmatprep.subr.bf16.mxu0 0
    %532 = vmatpush1.bf16.msra.mxu0 0
    %533 = vmatprep.subr.bf16.mxu0 0
    %534 = vmatpush1.bf16.msra.mxu0 0
    %535 = vmatprep.subr.bf16.mxu0 0
    %536 = vmatpush1.bf16.msra.mxu0 0
    %537 = vmatprep.subr.bf16.mxu0 0
    %538 = vmatpush1.bf16.msra.mxu0 0
    %539 = vmatprep.subr.bf16.mxu0 0
    %540 = vmatpush1.bf16.msra.mxu0 0
    %541 = vmatprep.subr.bf16.mxu0 0
    %542 = vmatpush1.bf16.msra.mxu0 0
    %543 = vmatprep.mubr.bf16.mxu0 0
    %544 = vmatmul.mubr.bf16.gmra.mrb[0].mxu0 %v81
    %v545 = vpop.f32.mrb[0].mxu0
    %v546 = vadd.f32 0.0, %v545
    %v547 = vpop.f32.mrb[0].mxu0
    %v548 = vadd.f32 0.0, %v547
    %v549 = vpop.f32.mrb[0].mxu0
    %v550 = vpop.f32.mrb[0].mxu0
    %551 = vdwg.mxu0
    %v556 = vunpack.c.l.b16 %v68
    %v557 = vunpack.c.h.b16 %v68
    %v558 = vunpack.c.l.b16 %v69
    %v559 = vunpack.c.h.b16 %v69
    %v560 = vunpack.c.l.b16 %v70
    %v561 = vunpack.c.h.b16 %v70
    %v562 = vunpack.c.l.b16 %v71
    %v563 = vpack.c.b16 %v556, %v556
    %v564 = vpack.c.b16 %v557, %v557
    %v565 = vpack.c.b16 %v558, %v558
    %v566 = vpack.c.b16 %v559, %v559
    %v567 = vpack.c.b16 %v560, %v560
    %v568 = vpack.c.b16 %v561, %v561
    %v569 = vpack.c.b16 %v562, %v562
    %v772 = vunpack.c.l.b16 %v82
    %v773 = vunpack.c.h.b16 %v82
    %v774 = vunpack.c.l.b16 %v83
    %v775 = vunpack.c.h.b16 %v83
    %v776 = vunpack.c.l.b16 %v84
    %v777 = vunpack.c.h.b16 %v84
    %v778 = vunpack.c.l.b16 %v85
    %v779 = vunpack.c.h.b16 %v85
    %v780 = vunpack.c.l.b16 %v86
    %v781 = vunpack.c.h.b16 %v86
    %v782 = vunpack.c.l.b16 %v87
    %v783 = vunpack.c.h.b16 %v87
    %v784 = vunpack.c.l.b16 %v88
    %v785 = vunpack.c.h.b16 %v88
    %v786 = vunpack.c.l.b16 %v89
    %v787 = vunpack.c.h.b16 %v89
    %v788 = vunpack.c.l.b16 %v90
    %v789 = vunpack.c.h.b16 %v90
    %v790 = vunpack.c.l.b16 %v91
    %v791 = vunpack.c.h.b16 %v91
    %v792 = vunpack.c.l.b16 %v92
    %v793 = vunpack.c.h.b16 %v92
    %v794 = vunpack.c.l.b16 %v93
    %v795 = vunpack.c.h.b16 %v93
    %v796 = vunpack.c.l.b16 %v94
    %v797 = vunpack.c.h.b16 %v94
    %v798 = vunpack.c.l.b16 %v95
    %v799 = vunpack.c.h.b16 %v95
    %v800 = vunpack.c.l.b16 %v96
    %v801 = vunpack.c.h.b16 %v96
    %v802 = vunpack.c.l.b16 %v97
    %v803 = vunpack.c.h.b16 %v97
    %v804 = vunpack.c.l.b16 %v98
    %v805 = vunpack.c.h.b16 %v98
    %v806 = vunpack.c.l.b16 %v99
    %v807 = vunpack.c.h.b16 %v99
    %v808 = vunpack.c.l.b16 %v100
    %v809 = vunpack.c.h.b16 %v100
    %v810 = vunpack.c.l.b16 %v101
    %v811 = vunpack.c.h.b16 %v101
    %v812 = vunpack.c.l.b16 %v102
    %v813 = vunpack.c.h.b16 %v102
    %v814 = vunpack.c.l.b16 %v103
    %v815 = vunpack.c.h.b16 %v103
    %v816 = vunpack.c.l.b16 %v104
    %v817 = vunpack.c.h.b16 %v104
    %v818 = vunpack.c.l.b16 %v105
    %v819 = vunpack.c.h.b16 %v105
    %v820 = vunpack.c.l.b16 %v106
    %v821 = vunpack.c.h.b16 %v106
    %v822 = vunpack.c.l.b16 %v107
    %v823 = vunpack.c.h.b16 %v107
    %v824 = vunpack.c.l.b16 %v108
    %v825 = vunpack.c.h.b16 %v108
    %v826 = vunpack.c.l.b16 %v109
    %v827 = vunpack.c.h.b16 %v109
    %v828 = vunpack.c.l.b16 %v110
    %v829 = vunpack.c.h.b16 %v110
    %v830 = vunpack.c.l.b16 %v111
    %v831 = vunpack.c.h.b16 %v111
    %v832 = vunpack.c.l.b16 %v112
    %v833 = vunpack.c.h.b16 %v112
    %v834 = vunpack.c.l.b16 %v113
    %v835 = vunpack.c.h.b16 %v113
    %v836 = vunpack.c.l.b16 %v114
    %v837 = vunpack.c.h.b16 %v114
    %v838 = vunpack.c.l.b16 %v115
    %v839 = vunpack.c.h.b16 %v115
    %v840 = vunpack.c.l.b16 %v116
    %v841 = vunpack.c.h.b16 %v116
    %v842 = vunpack.c.l.b16 %v117
    %v843 = vunpack.c.h.b16 %v117
    %v844 = vunpack.c.l.b16 %v118
    %v845 = vunpack.c.h.b16 %v118
    %v846 = vunpack.c.l.b16 %v119
    %v847 = vunpack.c.h.b16 %v119
    %v848 = vunpack.c.l.b16 %v120
    %v849 = vunpack.c.h.b16 %v120
    %v850 = vunpack.c.l.b16 %v121
    %v851 = vunpack.c.h.b16 %v121
    %v852 = vunpack.c.l.b16 %v122
    %v853 = vunpack.c.h.b16 %v122
    %v854 = vunpack.c.l.b16 %v123
    %v855 = vunpack.c.h.b16 %v123
    %v856 = vunpack.c.l.b16 %v124
    %v857 = vunpack.c.h.b16 %v124
    %v858 = vunpack.c.l.b16 %v125
    %v859 = vunpack.c.h.b16 %v125
    %v860 = vunpack.c.l.b16 %v126
    %v861 = vunpack.c.h.b16 %v126
    %v862 = vunpack.c.l.b16 %v127
    %v863 = vunpack.c.h.b16 %v127
    %v864 = vunpack.c.l.b16 %v128
    %v865 = vunpack.c.h.b16 %v128
    %v866 = vunpack.c.l.b16 %v129
    %v867 = vunpack.c.h.b16 %v129
    %v868 = vunpack.c.l.b16 %v130
    %v869 = vunpack.c.h.b16 %v130
    %v870 = vunpack.c.l.b16 %v131
    %v871 = vunpack.c.h.b16 %v131
    %v872 = vunpack.c.l.b16 %v132
    %v873 = vunpack.c.h.b16 %v132
    %v874 = vunpack.c.l.b16 %v133
    %v875 = vunpack.c.h.b16 %v133
    %v876 = vunpack.c.l.b16 %v134
    %v877 = vunpack.c.h.b16 %v134
    %v878 = vunpack.c.l.b16 %v135
    %v879 = vunpack.c.h.b16 %v135
    %v880 = vunpack.c.l.b16 %v136
    %v881 = vunpack.c.h.b16 %v136
    %v882 = vunpack.c.l.b16 %v137
    %v883 = vunpack.c.h.b16 %v137
    %v884 = vunpack.c.l.b16 %v138
    %v885 = vunpack.c.h.b16 %v138
    %v886 = vunpack.c.l.b16 %v139
    %v887 = vunpack.c.h.b16 %v139
    %v888 = vunpack.c.l.b16 %v140
    %v889 = vunpack.c.h.b16 %v140
    %v890 = vunpack.c.l.b16 %v141
    %v891 = vunpack.c.h.b16 %v141
    %v892 = vunpack.c.l.b16 %v142
    %v893 = vunpack.c.h.b16 %v142
    %v894 = vunpack.c.l.b16 %v143
    %v895 = vunpack.c.h.b16 %v143
    %v896 = vunpack.c.l.b16 %v144
    %v897 = vunpack.c.h.b16 %v144
    %v898 = vunpack.c.l.b16 %v145
    %v899 = vunpack.c.h.b16 %v145
    %v900 = vunpack.c.l.b16 %v146
    %v901 = vunpack.c.h.b16 %v146
    %v902 = vunpack.c.l.b16 %v147
    %v903 = vunpack.c.h.b16 %v147
    %v904 = vunpack.c.l.b16 %v148
    %v905 = vunpack.c.h.b16 %v148
    %v906 = vunpack.c.l.b16 %v149
    %v907 = vunpack.c.h.b16 %v149
    %v908 = vunpack.c.l.b16 %v150
    %v909 = vunpack.c.h.b16 %v150
    %v910 = vunpack.c.l.b16 %v151
    %v911 = vunpack.c.h.b16 %v151
    %v912 = vunpack.c.l.b16 %v152
    %v913 = vunpack.c.h.b16 %v152
    %v914 = vunpack.c.l.b16 %v153
    %v915 = vunpack.c.h.b16 %v153
    %v916 = vunpack.c.l.b16 %v154
    %v917 = vunpack.c.h.b16 %v154
    %v918 = vunpack.c.l.b16 %v155
    %v919 = vunpack.c.h.b16 %v155
    %v920 = vunpack.c.l.b16 %v156
    %v921 = vunpack.c.h.b16 %v156
    %v922 = vunpack.c.l.b16 %v157
    %v923 = vunpack.c.h.b16 %v157
    %v924 = vunpack.c.l.b16 %v158
    %v925 = vunpack.c.h.b16 %v158
    %v926 = vunpack.c.l.b16 %v159
    %v927 = vunpack.c.h.b16 %v159
    %v928 = vunpack.c.l.b16 %v160
    %v929 = vunpack.c.h.b16 %v160
    %v930 = vunpack.c.l.b16 %v161
    %v931 = vunpack.c.h.b16 %v161
    %v932 = vunpack.c.l.b16 %v162
    %v933 = vunpack.c.h.b16 %v162
    %v934 = vunpack.c.l.b16 %v163
    %v935 = vunpack.c.h.b16 %v163
    %v936 = vunpack.c.l.b16 %v164
    %v937 = vunpack.c.h.b16 %v164
    %v938 = vunpack.c.l.b16 %v165
    %v939 = vunpack.c.h.b16 %v165
    %v940 = vunpack.c.l.b16 %v166
    %v941 = vunpack.c.h.b16 %v166
    %v942 = vunpack.c.l.b16 %v167
    %v943 = vunpack.c.h.b16 %v167
    %v944 = vunpack.c.l.b16 %v168
    %v945 = vunpack.c.h.b16 %v168
    %v946 = vunpack.c.l.b16 %v169
    %v947 = vunpack.c.h.b16 %v169
    %v948 = vunpack.c.l.b16 %v170
    %v949 = vunpack.c.h.b16 %v170
    %v950 = vunpack.c.l.b16 %v171
    %v951 = vunpack.c.h.b16 %v171
    %v952 = vunpack.c.l.b16 %v172
    %v953 = vunpack.c.h.b16 %v172
    %v954 = vunpack.c.l.b16 %v173
    %v955 = vunpack.c.h.b16 %v173
    %v956 = vunpack.c.l.b16 %v174
    %v957 = vunpack.c.h.b16 %v174
    %v958 = vunpack.c.l.b16 %v175
    %v959 = vunpack.c.h.b16 %v175
    %v960 = vunpack.c.l.b16 %v176
    %v961 = vunpack.c.h.b16 %v176
    %v962 = vunpack.c.l.b16 %v177
    %v963 = vunpack.c.h.b16 %v177
    %v964 = vunpack.c.l.b16 %v178
    %v965 = vunpack.c.h.b16 %v178
    %v966 = vunpack.c.l.b16 %v179
    %v967 = vunpack.c.h.b16 %v179
    %v968 = vunpack.c.l.b16 %v180
    %v969 = vunpack.c.h.b16 %v180
    %v970 = vunpack.c.l.b16 %v181
    %v971 = vunpack.c.h.b16 %v181
    %v972 = vunpack.c.l.b16 %v182
    %v973 = vunpack.c.h.b16 %v182
    %v974 = vunpack.c.l.b16 %v183
    %v975 = vunpack.c.h.b16 %v183
    %v976 = vunpack.c.l.b16 %v184
    %v977 = vunpack.c.h.b16 %v184
    %v978 = vunpack.c.l.b16 %v185
    %v979 = vunpack.c.h.b16 %v185
    %v980 = vunpack.c.l.b16 %v186
    %v981 = vunpack.c.h.b16 %v186
    %v982 = vunpack.c.l.b16 %v187
    %v983 = vunpack.c.h.b16 %v187
    %v984 = vunpack.c.l.b16 %v188
    %v985 = vunpack.c.h.b16 %v188
    %v986 = vunpack.c.l.b16 %v189
    %v987 = vunpack.c.h.b16 %v189
    %v988 = vunpack.c.l.b16 %v190
    %v989 = vunpack.c.h.b16 %v190
    %v990 = vunpack.c.l.b16 %v191
    %v991 = vunpack.c.h.b16 %v191
    %v992 = vunpack.c.l.b16 %v192
    %v993 = vunpack.c.h.b16 %v192
    %v994 = vunpack.c.l.b16 %v193
    %v995 = vunpack.c.h.b16 %v193
    %v996 = vunpack.c.l.b16 %v194
    %v997 = vunpack.c.h.b16 %v194
    %v998 = vunpack.c.l.b16 %v195
    %v999 = vunpack.c.h.b16 %v195
    %v1000 = vunpack.c.l.b16 %v196
    %v1001 = vunpack.c.h.b16 %v196
    %v1002 = vunpack.c.l.b16 %v197
    %v1003 = vunpack.c.h.b16 %v197
    %v1004 = vunpack.c.l.b16 %v198
    %v1005 = vunpack.c.h.b16 %v198
    %v1006 = vunpack.c.l.b16 %v199
    %v1007 = vunpack.c.h.b16 %v199
    %v1008 = vunpack.c.l.b16 %v200
    %v1009 = vunpack.c.h.b16 %v200
    %v1010 = vunpack.c.l.b16 %v201
    %v1011 = vunpack.c.h.b16 %v201
    %v1012 = vunpack.c.l.b16 %v202
    %v1013 = vunpack.c.h.b16 %v202
    %v1014 = vunpack.c.l.b16 %v203
    %v1015 = vunpack.c.h.b16 %v203
    %v1016 = vunpack.c.l.b16 %v204
    %v1017 = vunpack.c.h.b16 %v204
    %v1018 = vunpack.c.l.b16 %v205
    %v1019 = vunpack.c.h.b16 %v205
    %v1020 = vunpack.c.l.b16 %v206
    %v1021 = vunpack.c.h.b16 %v206
    %v1022 = vunpack.c.l.b16 %v207
    %v1023 = vunpack.c.h.b16 %v207
    %v1024 = vunpack.c.l.b16 %v208
    %v1025 = vunpack.c.h.b16 %v208
    %v1026 = vunpack.c.l.b16 %v209
    %v1027 = vunpack.c.h.b16 %v209
    %v1028 = vunpack.c.l.b16 %v210
    %v1029 = vunpack.c.h.b16 %v210
    %v1030 = vunpack.c.l.b16 %v211
    %v1031 = vunpack.c.h.b16 %v211
    %v1032 = vunpack.c.l.b16 %v212
    %v1033 = vunpack.c.h.b16 %v212
    %v1034 = vunpack.c.l.b16 %v213
    %v1035 = vunpack.c.h.b16 %v213
    %v1036 = vunpack.c.l.b16 %v214
    %v1037 = vunpack.c.h.b16 %v214
    %v1038 = vunpack.c.l.b16 %v215
    %v1039 = vunpack.c.h.b16 %v215
    %v1040 = vunpack.c.l.b16 %v216
    %v1041 = vunpack.c.h.b16 %v216
    %v1042 = vunpack.c.l.b16 %v217
    %v1043 = vunpack.c.h.b16 %v217
    %v1044 = vunpack.c.l.b16 %v218
    %v1045 = vunpack.c.h.b16 %v218
    %v1046 = vunpack.c.l.b16 %v219
    %v1047 = vunpack.c.h.b16 %v219
    %v1048 = vunpack.c.l.b16 %v220
    %v1049 = vunpack.c.h.b16 %v220
    %v1050 = vunpack.c.l.b16 %v221
    %v1051 = vunpack.c.h.b16 %v221
    %v1052 = vunpack.c.l.b16 %v222
    %v1053 = vunpack.c.h.b16 %v222
    %v1054 = vunpack.c.l.b16 %v223
    %v1055 = vunpack.c.h.b16 %v223
    %v1056 = vunpack.c.l.b16 %v224
    %v1057 = vunpack.c.h.b16 %v224
    %v1058 = vunpack.c.l.b16 %v225
    %v1059 = vunpack.c.h.b16 %v225
    %v1060 = vunpack.c.l.b16 %v226
    %v1061 = vunpack.c.h.b16 %v226
    %v1062 = vunpack.c.l.b16 %v227
    %v1063 = vunpack.c.h.b16 %v227
    %v1064 = vunpack.c.l.b16 %v228
    %v1065 = vunpack.c.h.b16 %v228
    %v1066 = vunpack.c.l.b16 %v229
    %v1067 = vunpack.c.h.b16 %v229
    %v1068 = vunpack.c.l.b16 %v230
    %v1069 = vunpack.c.h.b16 %v230
    %v1070 = vunpack.c.l.b16 %v231
    %v1071 = vunpack.c.h.b16 %v231
    %v1072 = vunpack.c.l.b16 %v232
    %v1073 = vunpack.c.h.b16 %v232
    %v1074 = vunpack.c.l.b16 %v233
    %v1075 = vunpack.c.h.b16 %v233
    %v1076 = vunpack.c.l.b16 %v234
    %v1077 = vunpack.c.h.b16 %v234
    %v1078 = vunpack.c.l.b16 %v235
    %v1079 = vunpack.c.h.b16 %v235
    %v1080 = vunpack.c.l.b16 %v236
    %v1081 = vunpack.c.h.b16 %v236
    %v1082 = vunpack.c.l.b16 %v237
    %v1083 = vunpack.c.h.b16 %v237
    %v1084 = vunpack.c.l.b16 %v238
    %v1085 = vunpack.c.h.b16 %v238
    %v1086 = vunpack.c.l.b16 %v239
    %v1087 = vunpack.c.h.b16 %v239
    %v1088 = vunpack.c.l.b16 %v240
    %v1089 = vunpack.c.h.b16 %v240
    %v1090 = vunpack.c.l.b16 %v241
    %v1091 = vunpack.c.h.b16 %v241
    %v1092 = vunpack.c.l.b16 %v242
    %v1093 = vunpack.c.h.b16 %v242
    %v1094 = vunpack.c.l.b16 %v243
    %v1095 = vunpack.c.h.b16 %v243
    %v1096 = vunpack.c.l.b16 %v244
    %v1097 = vunpack.c.h.b16 %v244
    %v1098 = vunpack.c.l.b16 %v245
    %v1099 = vunpack.c.h.b16 %v245
    %v1100 = vunpack.c.l.b16 %v246
    %v1101 = vunpack.c.h.b16 %v246
    %v1102 = vunpack.c.l.b16 %v247
    %v1103 = vunpack.c.h.b16 %v247
    %v1104 = vunpack.c.l.b16 %v248
    %v1105 = vunpack.c.h.b16 %v248
    %v1106 = vunpack.c.l.b16 %v249
    %v1107 = vunpack.c.h.b16 %v249
    %v1108 = vunpack.c.l.b16 %v250
    %v1109 = vunpack.c.h.b16 %v250
    %v1110 = vunpack.c.l.b16 %v251
    %v1111 = vunpack.c.h.b16 %v251
    %v1112 = vunpack.c.l.b16 %v252
    %v1113 = vunpack.c.h.b16 %v252
    %v1114 = vunpack.c.l.b16 %v253
    %v1115 = vunpack.c.h.b16 %v253
    %v1116 = vunpack.c.l.b16 %v254
    %v1117 = vunpack.c.h.b16 %v254
    %v1118 = vunpack.c.l.b16 %v255
    %v1119 = vunpack.c.h.b16 %v255
    %v1120 = vunpack.c.l.b16 %v256
    %v1121 = vunpack.c.h.b16 %v256
    %v1122 = vunpack.c.l.b16 %v257
    %v1123 = vunpack.c.h.b16 %v257
    %v1124 = vunpack.c.l.b16 %v258
    %v1125 = vunpack.c.h.b16 %v258
    %v1126 = vunpack.c.l.b16 %v259
    %v1127 = vunpack.c.h.b16 %v259
    %v1128 = vunpack.c.l.b16 %v260
    %v1129 = vunpack.c.h.b16 %v260
    %v1130 = vunpack.c.l.b16 %v261
    %v1131 = vunpack.c.h.b16 %v261
    %v1132 = vunpack.c.l.b16 %v262
    %v1133 = vunpack.c.h.b16 %v262
    %v1134 = vunpack.c.l.b16 %v263
    %v1135 = vunpack.c.h.b16 %v263
    %v1136 = vunpack.c.l.b16 %v264
    %v1137 = vunpack.c.h.b16 %v264
    %v1138 = vunpack.c.l.b16 %v265
    %v1139 = vunpack.c.h.b16 %v265
    %v1140 = vunpack.c.l.b16 %v266
    %v1141 = vunpack.c.h.b16 %v266
    %v1142 = vunpack.c.l.b16 %v267
    %v1143 = vunpack.c.h.b16 %v267
    %v1144 = vunpack.c.l.b16 %v268
    %v1145 = vunpack.c.h.b16 %v268
    %v1146 = vunpack.c.l.b16 %v269
    %v1147 = vunpack.c.h.b16 %v269
    %v1148 = vunpack.c.l.b16 %v270
    %v1149 = vunpack.c.h.b16 %v270
    %v1150 = vunpack.c.l.b16 %v271
    %v1151 = vunpack.c.h.b16 %v271
    %v1152 = vunpack.c.l.b16 %v272
    %v1153 = vunpack.c.h.b16 %v272
    %v1154 = vunpack.c.l.b16 %v273
    %v1155 = vunpack.c.h.b16 %v273
    %v1156 = vunpack.c.l.b16 %v274
    %v1157 = vunpack.c.h.b16 %v274
    %v1158 = vunpack.c.l.b16 %v275
    %v1159 = vunpack.c.h.b16 %v275
    %v1160 = vunpack.c.l.b16 %v276
    %v1161 = vunpack.c.h.b16 %v276
    %v1162 = vunpack.c.l.b16 %v277
    %v1163 = vunpack.c.h.b16 %v277
    %v1164 = vpack.c.b16 %v776, %v772
    %v1165 = vpack.c.b16 %v777, %v773
    %v1166 = vpack.c.b16 %v778, %v774
    %v1167 = vpack.c.b16 %v779, %v775
    %v1168 = vpack.c.b16 %v784, %v780
    %v1169 = vpack.c.b16 %v785, %v781
    %v1170 = vpack.c.b16 %v786, %v782
    %v1171 = vpack.c.b16 %v787, %v783
    %v1172 = vpack.c.b16 %v792, %v788
    %v1173 = vpack.c.b16 %v793, %v789
    %v1174 = vpack.c.b16 %v794, %v790
    %v1175 = vpack.c.b16 %v795, %v791
    %v1176 = vpack.c.b16 %v800, %v796
    %v1177 = vpack.c.b16 %v801, %v797
    %v1178 = vpack.c.b16 %v802, %v798
    %v1179 = vpack.c.b16 %v803, %v799
    %v1180 = vpack.c.b16 %v808, %v804
    %v1181 = vpack.c.b16 %v809, %v805
    %v1182 = vpack.c.b16 %v810, %v806
    %v1183 = vpack.c.b16 %v811, %v807
    %v1184 = vpack.c.b16 %v816, %v812
    %v1185 = vpack.c.b16 %v817, %v813
    %v1186 = vpack.c.b16 %v818, %v814
    %v1187 = vpack.c.b16 %v819, %v815
    %v1188 = vpack.c.b16 %v824, %v820
    %v1189 = vpack.c.b16 %v825, %v821
    %v1190 = vpack.c.b16 %v826, %v822
    %v1191 = vpack.c.b16 %v827, %v823
    %v1192 = vpack.c.b16 %v832, %v828
    %v1193 = vpack.c.b16 %v833, %v829
    %v1194 = vpack.c.b16 %v834, %v830
    %v1195 = vpack.c.b16 %v835, %v831
    %v1196 = vpack.c.b16 %v840, %v836
    %v1197 = vpack.c.b16 %v841, %v837
    %v1198 = vpack.c.b16 %v842, %v838
    %v1199 = vpack.c.b16 %v843, %v839
    %v1200 = vpack.c.b16 %v848, %v844
    %v1201 = vpack.c.b16 %v849, %v845
    %v1202 = vpack.c.b16 %v850, %v846
    %v1203 = vpack.c.b16 %v851, %v847
    %v1204 = vpack.c.b16 %v856, %v852
    %v1205 = vpack.c.b16 %v857, %v853
    %v1206 = vpack.c.b16 %v858, %v854
    %v1207 = vpack.c.b16 %v859, %v855
    %v1208 = vpack.c.b16 %v864, %v860
    %v1209 = vpack.c.b16 %v865, %v861
    %v1210 = vpack.c.b16 %v866, %v862
    %v1211 = vpack.c.b16 %v867, %v863
    %v1212 = vpack.c.b16 %v872, %v868
    %v1213 = vpack.c.b16 %v873, %v869
    %v1214 = vpack.c.b16 %v874, %v870
    %v1215 = vpack.c.b16 %v875, %v871
    %v1216 = vpack.c.b16 %v880, %v876
    %v1217 = vpack.c.b16 %v881, %v877
    %v1218 = vpack.c.b16 %v882, %v878
    %v1219 = vpack.c.b16 %v883, %v879
    %v1220 = vpack.c.b16 %v888, %v884
    %v1221 = vpack.c.b16 %v889, %v885
    %v1222 = vpack.c.b16 %v890, %v886
    %v1223 = vpack.c.b16 %v891, %v887
    %v1224 = vpack.c.b16 %v896, %v892
    %v1225 = vpack.c.b16 %v897, %v893
    %v1226 = vpack.c.b16 %v898, %v894
    %v1227 = vpack.c.b16 %v899, %v895
    %v1228 = vpack.c.b16 %v904, %v900
    %v1229 = vpack.c.b16 %v905, %v901
    %v1230 = vpack.c.b16 %v906, %v902
    %v1231 = vpack.c.b16 %v907, %v903
    %v1232 = vpack.c.b16 %v912, %v908
    %v1233 = vpack.c.b16 %v913, %v909
    %v1234 = vpack.c.b16 %v914, %v910
    %v1235 = vpack.c.b16 %v915, %v911
    %v1236 = vpack.c.b16 %v920, %v916
    %v1237 = vpack.c.b16 %v921, %v917
    %v1238 = vpack.c.b16 %v922, %v918
    %v1239 = vpack.c.b16 %v923, %v919
    %v1240 = vpack.c.b16 %v928, %v924
    %v1241 = vpack.c.b16 %v929, %v925
    %v1242 = vpack.c.b16 %v930, %v926
    %v1243 = vpack.c.b16 %v931, %v927
    %v1244 = vpack.c.b16 %v936, %v932
    %v1245 = vpack.c.b16 %v937, %v933
    %v1246 = vpack.c.b16 %v938, %v934
    %v1247 = vpack.c.b16 %v939, %v935
    %v1248 = vpack.c.b16 %v944, %v940
    %v1249 = vpack.c.b16 %v945, %v941
    %v1250 = vpack.c.b16 %v946, %v942
    %v1251 = vpack.c.b16 %v947, %v943
    %v1252 = vpack.c.b16 %v952, %v948
    %v1253 = vpack.c.b16 %v953, %v949
    %v1254 = vpack.c.b16 %v954, %v950
    %v1255 = vpack.c.b16 %v955, %v951
    %v1256 = vpack.c.b16 %v960, %v956
    %v1257 = vpack.c.b16 %v961, %v957
    %v1258 = vpack.c.b16 %v962, %v958
    %v1259 = vpack.c.b16 %v963, %v959
    %v1260 = vpack.c.b16 %v968, %v964
    %v1261 = vpack.c.b16 %v969, %v965
    %v1262 = vpack.c.b16 %v970, %v966
    %v1263 = vpack.c.b16 %v971, %v967
    %v1264 = vpack.c.b16 %v976, %v972
    %v1265 = vpack.c.b16 %v977, %v973
    %v1266 = vpack.c.b16 %v978, %v974
    %v1267 = vpack.c.b16 %v979, %v975
    %v1268 = vpack.c.b16 %v984, %v980
    %v1269 = vpack.c.b16 %v985, %v981
    %v1270 = vpack.c.b16 %v986, %v982
    %v1271 = vpack.c.b16 %v987, %v983
    %v1272 = vpack.c.b16 %v992, %v988
    %v1273 = vpack.c.b16 %v993, %v989
    %v1274 = vpack.c.b16 %v994, %v990
    %v1275 = vpack.c.b16 %v995, %v991
    %v1276 = vpack.c.b16 %v1000, %v996
    %v1277 = vpack.c.b16 %v1001, %v997
    %v1278 = vpack.c.b16 %v1002, %v998
    %v1279 = vpack.c.b16 %v1003, %v999
    %v1280 = vpack.c.b16 %v1008, %v1004
    %v1281 = vpack.c.b16 %v1009, %v1005
    %v1282 = vpack.c.b16 %v1010, %v1006
    %v1283 = vpack.c.b16 %v1011, %v1007
    %v1284 = vpack.c.b16 %v1016, %v1012
    %v1285 = vpack.c.b16 %v1017, %v1013
    %v1286 = vpack.c.b16 %v1018, %v1014
    %v1287 = vpack.c.b16 %v1019, %v1015
    %v1288 = vpack.c.b16 %v1024, %v1020
    %v1289 = vpack.c.b16 %v1025, %v1021
    %v1290 = vpack.c.b16 %v1026, %v1022
    %v1291 = vpack.c.b16 %v1027, %v1023
    %v1292 = vpack.c.b16 %v1032, %v1028
    %v1293 = vpack.c.b16 %v1033, %v1029
    %v1294 = vpack.c.b16 %v1034, %v1030
    %v1295 = vpack.c.b16 %v1035, %v1031
    %v1296 = vpack.c.b16 %v1040, %v1036
    %v1297 = vpack.c.b16 %v1041, %v1037
    %v1298 = vpack.c.b16 %v1042, %v1038
    %v1299 = vpack.c.b16 %v1043, %v1039
    %v1300 = vpack.c.b16 %v1048, %v1044
    %v1301 = vpack.c.b16 %v1049, %v1045
    %v1302 = vpack.c.b16 %v1050, %v1046
    %v1303 = vpack.c.b16 %v1051, %v1047
    %v1304 = vpack.c.b16 %v1056, %v1052
    %v1305 = vpack.c.b16 %v1057, %v1053
    %v1306 = vpack.c.b16 %v1058, %v1054
    %v1307 = vpack.c.b16 %v1059, %v1055
    %v1308 = vpack.c.b16 %v1064, %v1060
    %v1309 = vpack.c.b16 %v1065, %v1061
    %v1310 = vpack.c.b16 %v1066, %v1062
    %v1311 = vpack.c.b16 %v1067, %v1063
    %v1312 = vpack.c.b16 %v1072, %v1068
    %v1313 = vpack.c.b16 %v1073, %v1069
    %v1314 = vpack.c.b16 %v1074, %v1070
    %v1315 = vpack.c.b16 %v1075, %v1071
    %v1316 = vpack.c.b16 %v1080, %v1076
    %v1317 = vpack.c.b16 %v1081, %v1077
    %v1318 = vpack.c.b16 %v1082, %v1078
    %v1319 = vpack.c.b16 %v1083, %v1079
    %v1320 = vpack.c.b16 %v1088, %v1084
    %v1321 = vpack.c.b16 %v1089, %v1085
    %v1322 = vpack.c.b16 %v1090, %v1086
    %v1323 = vpack.c.b16 %v1091, %v1087
    %v1324 = vpack.c.b16 %v1096, %v1092
    %v1325 = vpack.c.b16 %v1097, %v1093
    %v1326 = vpack.c.b16 %v1098, %v1094
    %v1327 = vpack.c.b16 %v1099, %v1095
    %v1328 = vpack.c.b16 %v1104, %v1100
    %v1329 = vpack.c.b16 %v1105, %v1101
    %v1330 = vpack.c.b16 %v1106, %v1102
    %v1331 = vpack.c.b16 %v1107, %v1103
    %v1332 = vpack.c.b16 %v1112, %v1108
    %v1333 = vpack.c.b16 %v1113, %v1109
    %v1334 = vpack.c.b16 %v1114, %v1110
    %v1335 = vpack.c.b16 %v1115, %v1111
    %v1336 = vpack.c.b16 %v1120, %v1116
    %v1337 = vpack.c.b16 %v1121, %v1117
    %v1338 = vpack.c.b16 %v1122, %v1118
    %v1339 = vpack.c.b16 %v1123, %v1119
    %v1340 = vpack.c.b16 %v1128, %v1124
    %v1341 = vpack.c.b16 %v1129, %v1125
    %v1342 = vpack.c.b16 %v1130, %v1126
    %v1343 = vpack.c.b16 %v1131, %v1127
    %v1344 = vpack.c.b16 %v1136, %v1132
    %v1345 = vpack.c.b16 %v1137, %v1133
    %v1346 = vpack.c.b16 %v1138, %v1134
    %v1347 = vpack.c.b16 %v1139, %v1135
    %v1348 = vpack.c.b16 %v1144, %v1140
    %v1349 = vpack.c.b16 %v1145, %v1141
    %v1350 = vpack.c.b16 %v1146, %v1142
    %v1351 = vpack.c.b16 %v1147, %v1143
    %v1352 = vpack.c.b16 %v1152, %v1148
    %v1353 = vpack.c.b16 %v1153, %v1149
    %v1354 = vpack.c.b16 %v1154, %v1150
    %v1355 = vpack.c.b16 %v1155, %v1151
    %v1356 = vpack.c.b16 %v1160, %v1156
    %v1357 = vpack.c.b16 %v1161, %v1157
    %v1358 = vpack.c.b16 %v1162, %v1158
    %v1359 = vpack.c.b16 %v1163, %v1159
    %vm1556 = vcmask 130048
    %v1558 = vsel %vm1556, %v569, 0
    %1560 = vmatprep.subr.bf16.mxu0 %v1165
    %1561 = vmatpush1.bf16.msra.mxu0 %v1164
    %1562 = vmatprep.subr.bf16.mxu0 %v1169
    %1563 = vmatpush1.bf16.msra.mxu0 %v1168
    %1564 = vmatprep.subr.bf16.mxu0 %v1173
    %1565 = vmatpush1.bf16.msra.mxu0 %v1172
    %1566 = vmatprep.subr.bf16.mxu0 %v1177
    %1567 = vmatpush1.bf16.msra.mxu0 %v1176
    %1568 = vmatprep.subr.bf16.mxu0 %v1181
    %1569 = vmatpush1.bf16.msra.mxu0 %v1180
    %1570 = vmatprep.subr.bf16.mxu0 %v1185
    %1571 = vmatpush1.bf16.msra.mxu0 %v1184
    %1572 = vmatprep.subr.bf16.mxu0 %v1189
    %1573 = vmatpush1.bf16.msra.mxu0 %v1188
    %1574 = vmatprep.subr.bf16.mxu0 %v1193
    %1575 = vmatpush1.bf16.msra.mxu0 %v1192
    %1576 = vmatprep.subr.bf16.mxu0 %v1197
    %1577 = vmatpush1.bf16.msra.mxu0 %v1196
    %1578 = vmatprep.subr.bf16.mxu0 %v1201
    %1579 = vmatpush1.bf16.msra.mxu0 %v1200
    %1580 = vmatprep.subr.bf16.mxu0 %v1205
    %1581 = vmatpush1.bf16.msra.mxu0 %v1204
    %1582 = vmatprep.subr.bf16.mxu0 %v1209
    %1583 = vmatpush1.bf16.msra.mxu0 %v1208
    %1584 = vmatprep.subr.bf16.mxu0 %v1213
    %1585 = vmatpush1.bf16.msra.mxu0 %v1212
    %1586 = vmatprep.subr.bf16.mxu0 %v1217
    %1587 = vmatpush1.bf16.msra.mxu0 %v1216
    %1588 = vmatprep.subr.bf16.mxu0 %v1221
    %1589 = vmatpush1.bf16.msra.mxu0 %v1220
    %1590 = vmatprep.subr.bf16.mxu0 %v1225
    %1591 = vmatpush1.bf16.msra.mxu0 %v1224
    %1592 = vmatprep.mubr.bf16.mxu0 %v564
    %1593 = vmatmul.mubr.bf16.gmra.mrb[0].mxu0 %v563
    %v1594 = vpop.f32.mrb[0].mxu0
    %v1595 = vadd.f32 %v505, %v1594
    %v1596 = vpop.f32.mrb[0].mxu0
    %v1597 = vadd.f32 %v507, %v1596
    %v1598 = vpop.f32.mrb[0].mxu0
    %v1599 = vpop.f32.mrb[0].mxu0
    %1600 = vdwg.mxu0
    %1601 = vmatprep.subr.bf16.mxu0 %v1229
    %1602 = vmatpush1.bf16.msra.mxu0 %v1228
    %1603 = vmatprep.subr.bf16.mxu0 %v1233
    %1604 = vmatpush1.bf16.msra.mxu0 %v1232
    %1605 = vmatprep.subr.bf16.mxu0 %v1237
    %1606 = vmatpush1.bf16.msra.mxu0 %v1236
    %1607 = vmatprep.subr.bf16.mxu0 %v1241
    %1608 = vmatpush1.bf16.msra.mxu0 %v1240
    %1609 = vmatprep.subr.bf16.mxu0 %v1245
    %1610 = vmatpush1.bf16.msra.mxu0 %v1244
    %1611 = vmatprep.subr.bf16.mxu0 %v1249
    %1612 = vmatpush1.bf16.msra.mxu0 %v1248
    %1613 = vmatprep.subr.bf16.mxu0 %v1253
    %1614 = vmatpush1.bf16.msra.mxu0 %v1252
    %1615 = vmatprep.subr.bf16.mxu0 %v1257
    %1616 = vmatpush1.bf16.msra.mxu0 %v1256
    %1617 = vmatprep.subr.bf16.mxu0 %v1261
    %1618 = vmatpush1.bf16.msra.mxu0 %v1260
    %1619 = vmatprep.subr.bf16.mxu0 %v1265
    %1620 = vmatpush1.bf16.msra.mxu0 %v1264
    %1621 = vmatprep.subr.bf16.mxu0 %v1269
    %1622 = vmatpush1.bf16.msra.mxu0 %v1268
    %1623 = vmatprep.subr.bf16.mxu0 %v1273
    %1624 = vmatpush1.bf16.msra.mxu0 %v1272
    %1625 = vmatprep.subr.bf16.mxu0 %v1277
    %1626 = vmatpush1.bf16.msra.mxu0 %v1276
    %1627 = vmatprep.subr.bf16.mxu0 %v1281
    %1628 = vmatpush1.bf16.msra.mxu0 %v1280
    %1629 = vmatprep.subr.bf16.mxu0 %v1285
    %1630 = vmatpush1.bf16.msra.mxu0 %v1284
    %1631 = vmatprep.subr.bf16.mxu0 %v1289
    %1632 = vmatpush1.bf16.msra.mxu0 %v1288
    %1633 = vmatprep.mubr.bf16.mxu0 %v566
    %1634 = vmatmul.mubr.bf16.gmra.mrb[0].mxu0 %v565
    %v1635 = vpop.f32.mrb[0].mxu0
    %v1636 = vadd.f32 %v1595, %v1635
    %v1637 = vpop.f32.mrb[0].mxu0
    %v1638 = vadd.f32 %v1597, %v1637
    %v1639 = vpop.f32.mrb[0].mxu0
    %v1640 = vpop.f32.mrb[0].mxu0
    %1641 = vdwg.mxu0
    %1642 = vmatprep.subr.bf16.mxu0 %v1293
    %1643 = vmatpush1.bf16.msra.mxu0 %v1292
    %1644 = vmatprep.subr.bf16.mxu0 %v1297
    %1645 = vmatpush1.bf16.msra.mxu0 %v1296
    %1646 = vmatprep.subr.bf16.mxu0 %v1301
    %1647 = vmatpush1.bf16.msra.mxu0 %v1300
    %1648 = vmatprep.subr.bf16.mxu0 %v1305
    %1649 = vmatpush1.bf16.msra.mxu0 %v1304
    %1650 = vmatprep.subr.bf16.mxu0 %v1309
    %1651 = vmatpush1.bf16.msra.mxu0 %v1308
    %1652 = vmatprep.subr.bf16.mxu0 %v1313
    %1653 = vmatpush1.bf16.msra.mxu0 %v1312
    %1654 = vmatprep.subr.bf16.mxu0 %v1317
    %1655 = vmatpush1.bf16.msra.mxu0 %v1316
    %1656 = vmatprep.subr.bf16.mxu0 %v1321
    %1657 = vmatpush1.bf16.msra.mxu0 %v1320
    %1658 = vmatprep.subr.bf16.mxu0 %v1325
    %1659 = vmatpush1.bf16.msra.mxu0 %v1324
    %1660 = vmatprep.subr.bf16.mxu0 %v1329
    %1661 = vmatpush1.bf16.msra.mxu0 %v1328
    %1662 = vmatprep.subr.bf16.mxu0 %v1333
    %1663 = vmatpush1.bf16.msra.mxu0 %v1332
    %1664 = vmatprep.subr.bf16.mxu0 %v1337
    %1665 = vmatpush1.bf16.msra.mxu0 %v1336
    %1666 = vmatprep.subr.bf16.mxu0 %v1341
    %1667 = vmatpush1.bf16.msra.mxu0 %v1340
    %1668 = vmatprep.subr.bf16.mxu0 %v1345
    %1669 = vmatpush1.bf16.msra.mxu0 %v1344
    %1670 = vmatprep.subr.bf16.mxu0 %v1349
    %1671 = vmatpush1.bf16.msra.mxu0 %v1348
    %1672 = vmatprep.subr.bf16.mxu0 %v1353
    %1673 = vmatpush1.bf16.msra.mxu0 %v1352
    %1674 = vmatprep.mubr.bf16.mxu0 %v568
    %1675 = vmatmul.mubr.bf16.gmra.mrb[0].mxu0 %v567
    %v1676 = vpop.f32.mrb[0].mxu0
    %v1677 = vadd.f32 %v1636, %v1676
    %v1678 = vpop.f32.mrb[0].mxu0
    %v1679 = vadd.f32 %v1638, %v1678
    %v1680 = vpop.f32.mrb[0].mxu0
    %v1681 = vpop.f32.mrb[0].mxu0
    %1682 = vdwg.mxu0
    %1683 = vmatprep.subr.bf16.mxu0 %v1357
    %1684 = vmatpush1.bf16.msra.mxu0 %v1356
    %1685 = vmatprep.subr.bf16.mxu0 0
    %1686 = vmatpush1.bf16.msra.mxu0 0
    %1687 = vmatprep.subr.bf16.mxu0 0
    %1688 = vmatpush1.bf16.msra.mxu0 0
    %1689 = vmatprep.subr.bf16.mxu0 0
    %1690 = vmatpush1.bf16.msra.mxu0 0
    %1691 = vmatprep.subr.bf16.mxu0 0
    %1692 = vmatpush1.bf16.msra.mxu0 0
    %1693 = vmatprep.subr.bf16.mxu0 0
    %1694 = vmatpush1.bf16.msra.mxu0 0
    %1695 = vmatprep.subr.bf16.mxu0 0
    %1696 = vmatpush1.bf16.msra.mxu0 0
    %1697 = vmatprep.subr.bf16.mxu0 0
    %1698 = vmatpush1.bf16.msra.mxu0 0
    %1699 = vmatprep.subr.bf16.mxu0 0
    %1700 = vmatpush1.bf16.msra.mxu0 0
    %1701 = vmatprep.subr.bf16.mxu0 0
    %1702 = vmatpush1.bf16.msra.mxu0 0
    %1703 = vmatprep.subr.bf16.mxu0 0
    %1704 = vmatpush1.bf16.msra.mxu0 0
    %1705 = vmatprep.subr.bf16.mxu0 0
    %1706 = vmatpush1.bf16.msra.mxu0 0
    %1707 = vmatprep.subr.bf16.mxu0 0
    %1708 = vmatpush1.bf16.msra.mxu0 0
    %1709 = vmatprep.subr.bf16.mxu0 0
    %1710 = vmatpush1.bf16.msra.mxu0 0
    %1711 = vmatprep.subr.bf16.mxu0 0
    %1712 = vmatpush1.bf16.msra.mxu0 0
    %1713 = vmatprep.subr.bf16.mxu0 0
    %1714 = vmatpush1.bf16.msra.mxu0 0
    %1715 = vmatprep.mubr.bf16.mxu0 0
    %1716 = vmatmul.mubr.bf16.gmra.mrb[0].mxu0 %v1558
    %v1717 = vpop.f32.mrb[0].mxu0
    %v1718 = vadd.f32 %v1677, %v1717
    %v1719 = vpop.f32.mrb[0].mxu0
    %v1720 = vadd.f32 %v1679, %v1719
    %v1721 = vpop.f32.mrb[0].mxu0
    %v1722 = vpop.f32.mrb[0].mxu0
    %1723 = vdwg.mxu0
    %1724 = vmatprep.subr.bf16.mxu0 %v1167
    %1725 = vmatpush1.bf16.msra.mxu0 %v1166
    %1726 = vmatprep.subr.bf16.mxu0 %v1171
    %1727 = vmatpush1.bf16.msra.mxu0 %v1170
    %1728 = vmatprep.subr.bf16.mxu0 %v1175
    %1729 = vmatpush1.bf16.msra.mxu0 %v1174
    %1730 = vmatprep.subr.bf16.mxu0 %v1179
    %1731 = vmatpush1.bf16.msra.mxu0 %v1178
    %1732 = vmatprep.subr.bf16.mxu0 %v1183
    %1733 = vmatpush1.bf16.msra.mxu0 %v1182
    %1734 = vmatprep.subr.bf16.mxu0 %v1187
    %1735 = vmatpush1.bf16.msra.mxu0 %v1186
    %1736 = vmatprep.subr.bf16.mxu0 %v1191
    %1737 = vmatpush1.bf16.msra.mxu0 %v1190
    %1738 = vmatprep.subr.bf16.mxu0 %v1195
    %1739 = vmatpush1.bf16.msra.mxu0 %v1194
    %1740 = vmatprep.subr.bf16.mxu0 %v1199
    %1741 = vmatpush1.bf16.msra.mxu0 %v1198
    %1742 = vmatprep.subr.bf16.mxu0 %v1203
    %1743 = vmatpush1.bf16.msra.mxu0 %v1202
    %1744 = vmatprep.subr.bf16.mxu0 %v1207
    %1745 = vmatpush1.bf16.msra.mxu0 %v1206
    %1746 = vmatprep.subr.bf16.mxu0 %v1211
    %1747 = vmatpush1.bf16.msra.mxu0 %v1210
    %1748 = vmatprep.subr.bf16.mxu0 %v1215
    %1749 = vmatpush1.bf16.msra.mxu0 %v1214
    %1750 = vmatprep.subr.bf16.mxu0 %v1219
    %1751 = vmatpush1.bf16.msra.mxu0 %v1218
    %1752 = vmatprep.subr.bf16.mxu0 %v1223
    %1753 = vmatpush1.bf16.msra.mxu0 %v1222
    %1754 = vmatprep.subr.bf16.mxu0 %v1227
    %1755 = vmatpush1.bf16.msra.mxu0 %v1226
    %1756 = vmatprep.mubr.bf16.mxu0 %v564
    %1757 = vmatmul.mubr.bf16.gmra.mrb[0].mxu0 %v563
    %v1758 = vpop.f32.mrb[0].mxu0
    %v1759 = vadd.f32 %v546, %v1758
    %v1760 = vpop.f32.mrb[0].mxu0
    %v1761 = vadd.f32 %v548, %v1760
    %v1762 = vpop.f32.mrb[0].mxu0
    %v1763 = vpop.f32.mrb[0].mxu0
    %1764 = vdwg.mxu0
    %1765 = vmatprep.subr.bf16.mxu0 %v1231
    %1766 = vmatpush1.bf16.msra.mxu0 %v1230
    %1767 = vmatprep.subr.bf16.mxu0 %v1235
    %1768 = vmatpush1.bf16.msra.mxu0 %v1234
    %1769 = vmatprep.subr.bf16.mxu0 %v1239
    %1770 = vmatpush1.bf16.msra.mxu0 %v1238
    %1771 = vmatprep.subr.bf16.mxu0 %v1243
    %1772 = vmatpush1.bf16.msra.mxu0 %v1242
    %1773 = vmatprep.subr.bf16.mxu0 %v1247
    %1774 = vmatpush1.bf16.msra.mxu0 %v1246
    %1775 = vmatprep.subr.bf16.mxu0 %v1251
    %1776 = vmatpush1.bf16.msra.mxu0 %v1250
    %1777 = vmatprep.subr.bf16.mxu0 %v1255
    %1778 = vmatpush1.bf16.msra.mxu0 %v1254
    %1779 = vmatprep.subr.bf16.mxu0 %v1259
    %1780 = vmatpush1.bf16.msra.mxu0 %v1258
    %1781 = vmatprep.subr.bf16.mxu0 %v1263
    %1782 = vmatpush1.bf16.msra.mxu0 %v1262
    %1783 = vmatprep.subr.bf16.mxu0 %v1267
    %1784 = vmatpush1.bf16.msra.mxu0 %v1266
    %1785 = vmatprep.subr.bf16.mxu0 %v1271
    %1786 = vmatpush1.bf16.msra.mxu0 %v1270
    %1787 = vmatprep.subr.bf16.mxu0 %v1275
    %1788 = vmatpush1.bf16.msra.mxu0 %v1274
    %1789 = vmatprep.subr.bf16.mxu0 %v1279
    %1790 = vmatpush1.bf16.msra.mxu0 %v1278
    %1791 = vmatprep.subr.bf16.mxu0 %v1283
    %1792 = vmatpush1.bf16.msra.mxu0 %v1282
    %1793 = vmatprep.subr.bf16.mxu0 %v1287
    %1794 = vmatpush1.bf16.msra.mxu0 %v1286
    %1795 = vmatprep.subr.bf16.mxu0 %v1291
    %1796 = vmatpush1.bf16.msra.mxu0 %v1290
    %1797 = vmatprep.mubr.bf16.mxu0 %v566
    %1798 = vmatmul.mubr.bf16.gmra.mrb[0].mxu0 %v565
    %v1799 = vpop.f32.mrb[0].mxu0
    %v1800 = vadd.f32 %v1759, %v1799
    %v1801 = vpop.f32.mrb[0].mxu0
    %v1802 = vadd.f32 %v1761, %v1801
    %v1803 = vpop.f32.mrb[0].mxu0
    %v1804 = vpop.f32.mrb[0].mxu0
    %1805 = vdwg.mxu0
    %1806 = vmatprep.subr.bf16.mxu0 %v1295
    %1807 = vmatpush1.bf16.msra.mxu0 %v1294
    %1808 = vmatprep.subr.bf16.mxu0 %v1299
    %1809 = vmatpush1.bf16.msra.mxu0 %v1298
    %1810 = vmatprep.subr.bf16.mxu0 %v1303
    %1811 = vmatpush1.bf16.msra.mxu0 %v1302
    %1812 = vmatprep.subr.bf16.mxu0 %v1307
    %1813 = vmatpush1.bf16.msra.mxu0 %v1306
    %1814 = vmatprep.subr.bf16.mxu0 %v1311
    %1815 = vmatpush1.bf16.msra.mxu0 %v1310
    %1816 = vmatprep.subr.bf16.mxu0 %v1315
    %1817 = vmatpush1.bf16.msra.mxu0 %v1314
    %1818 = vmatprep.subr.bf16.mxu0 %v1319
    %1819 = vmatpush1.bf16.msra.mxu0 %v1318
    %1820 = vmatprep.subr.bf16.mxu0 %v1323
    %1821 = vmatpush1.bf16.msra.mxu0 %v1322
    %1822 = vmatprep.subr.bf16.mxu0 %v1327
    %1823 = vmatpush1.bf16.msra.mxu0 %v1326
    %1824 = vmatprep.subr.bf16.mxu0 %v1331
    %1825 = vmatpush1.bf16.msra.mxu0 %v1330
    %1826 = vmatprep.subr.bf16.mxu0 %v1335
    %1827 = vmatpush1.bf16.msra.mxu0 %v1334
    %1828 = vmatprep.subr.bf16.mxu0 %v1339
    %1829 = vmatpush1.bf16.msra.mxu0 %v1338
    %1830 = vmatprep.subr.bf16.mxu0 %v1343
    %1831 = vmatpush1.bf16.msra.mxu0 %v1342
    %1832 = vmatprep.subr.bf16.mxu0 %v1347
    %1833 = vmatpush1.bf16.msra.mxu0 %v1346
    %1834 = vmatprep.subr.bf16.mxu0 %v1351
    %1835 = vmatpush1.bf16.msra.mxu0 %v1350
    %1836 = vmatprep.subr.bf16.mxu0 %v1355
    %1837 = vmatpush1.bf16.msra.mxu0 %v1354
    %1838 = vmatprep.mubr.bf16.mxu0 %v568
    %1839 = vmatmul.mubr.bf16.gmra.mrb[0].mxu0 %v567
    %v1840 = vpop.f32.mrb[0].mxu0
    %v1841 = vadd.f32 %v1800, %v1840
    %v1842 = vpop.f32.mrb[0].mxu0
    %v1843 = vadd.f32 %v1802, %v1842
    %v1844 = vpop.f32.mrb[0].mxu0
    %v1845 = vpop.f32.mrb[0].mxu0
    %1846 = vdwg.mxu0
    %1847 = vmatprep.subr.bf16.mxu0 %v1359
    %1848 = vmatpush1.bf16.msra.mxu0 %v1358
    %1849 = vmatprep.subr.bf16.mxu0 0
    %1850 = vmatpush1.bf16.msra.mxu0 0
    %1851 = vmatprep.subr.bf16.mxu0 0
    %1852 = vmatpush1.bf16.msra.mxu0 0
    %1853 = vmatprep.subr.bf16.mxu0 0
    %1854 = vmatpush1.bf16.msra.mxu0 0
    %1855 = vmatprep.subr.bf16.mxu0 0
    %1856 = vmatpush1.bf16.msra.mxu0 0
    %1857 = vmatprep.subr.bf16.mxu0 0
    %1858 = vmatpush1.bf16.msra.mxu0 0
    %1859 = vmatprep.subr.bf16.mxu0 0
    %1860 = vmatpush1.bf16.msra.mxu0 0
    %1861 = vmatprep.subr.bf16.mxu0 0
    %1862 = vmatpush1.bf16.msra.mxu0 0
    %1863 = vmatprep.subr.bf16.mxu0 0
    %1864 = vmatpush1.bf16.msra.mxu0 0
    %1865 = vmatprep.subr.bf16.mxu0 0
    %1866 = vmatpush1.bf16.msra.mxu0 0
    %1867 = vmatprep.subr.bf16.mxu0 0
    %1868 = vmatpush1.bf16.msra.mxu0 0
    %1869 = vmatprep.subr.bf16.mxu0 0
    %1870 = vmatpush1.bf16.msra.mxu0 0
    %1871 = vmatprep.subr.bf16.mxu0 0
    %1872 = vmatpush1.bf16.msra.mxu0 0
    %1873 = vmatprep.subr.bf16.mxu0 0
    %1874 = vmatpush1.bf16.msra.mxu0 0
    %1875 = vmatprep.subr.bf16.mxu0 0
    %1876 = vmatpush1.bf16.msra.mxu0 0
    %1877 = vmatprep.subr.bf16.mxu0 0
    %1878 = vmatpush1.bf16.msra.mxu0 0
    %1879 = vmatprep.mubr.bf16.mxu0 0
    %1880 = vmatmul.mubr.bf16.gmra.mrb[0].mxu0 %v1558
    %v1881 = vpop.f32.mrb[0].mxu0
    %v1882 = vadd.f32 %v1841, %v1881
    %v1883 = vpop.f32.mrb[0].mxu0
    %v1884 = vadd.f32 %v1843, %v1883
    %v1885 = vpop.f32.mrb[0].mxu0
    %v1886 = vpop.f32.mrb[0].mxu0
    %1887 = vdwg.mxu0
    %v1888 = vld [vmem:[%s4] sm:$0xf]
    %v1890 = vlaneseq
    %v1891 = vshrl.u32 %v1890, 7
    %v1892 = vsub.s32 0, %v1891
    %v1893 = vrot.slane %v1888, %v1892
    %v1894 = vlaneseq
    %v1895 = vshrl.u32 %v1894, 7
    %v1896 = vsub.s32 1, %v1895
    %v1897 = vrot.slane %v1888, %v1896
    %v1898 = vlaneseq
    %v1899 = vshrl.u32 %v1898, 7
    %v1900 = vsub.s32 2, %v1899
    %v1901 = vrot.slane %v1888, %v1900
    %v1902 = vlaneseq
    %v1903 = vshrl.u32 %v1902, 7
    %v1904 = vsub.s32 3, %v1903
    %v1905 = vrot.slane %v1888, %v1904
    %v1910 = vadd.f32 %v1718, %v1893
    %v1911 = vadd.f32 %v1720, %v1897
    %v1912 = vadd.f32 %v1882, %v1901
    %v1913 = vadd.f32 %v1884, %v1905
    %v1914 = vmax.f32 %v1910, 0.0
    %v1915 = vmax.f32 %v1911, 0.0
    %v1916 = vmax.f32 %v1912, 0.0
    %v1917 = vmax.f32 %v1913, 0.0
    %v1918 = vpack.c.bf16 %v1914, %v1914
    %v1919 = vpack.c.bf16 %v1915, %v1915
    %v1920 = vpack.c.bf16 %v1916, %v1916
    %v1921 = vpack.c.bf16 %v1917, %v1917
    %v1922 = vld [vmem:[#allocation6] sm:$0xf]
    %v1923 = vld [vmem:[#allocation6 + $0x4] sm:$0xf]
    %v1924 = vld [vmem:[#allocation6 + $0x8] sm:$0xf]
    %v1925 = vld [vmem:[#allocation6 + $0xc] sm:$0xf]
    %v1926 = vld [vmem:[#allocation6 + $0x10] sm:$0xf]
    %v1927 = vld [vmem:[#allocation6 + $0x14] sm:$0xf]
    %v1928 = vld [vmem:[#allocation6 + $0x18] sm:$0xf]
    %v1929 = vld [vmem:[#allocation6 + $0x1c] sm:$0xf]
    %v1930 = vld [vmem:[#allocation6 + $0x20] sm:$0xf]
    %v1931 = vld [vmem:[#allocation6 + $0x24] sm:$0xf]
    %v1932 = vld [vmem:[#allocation6 + $0x28] sm:$0xf]
    %v1933 = vld [vmem:[#allocation6 + $0x2c] sm:$0xf]
    %v1934 = vld [vmem:[#allocation6 + $0x30] sm:$0xf]
    %v1935 = vld [vmem:[#allocation6 + $0x34] sm:$0xf]
    %v1936 = vld [vmem:[#allocation6 + $0x38] sm:$0xf]
    %v1937 = vld [vmem:[#allocation6 + $0x3c] sm:$0xf]
    %v1938 = vld [vmem:[#allocation6 + $0x40] sm:$0xf]
    %v1939 = vld [vmem:[#allocation6 + $0x44] sm:$0xf]
    %v1940 = vld [vmem:[#allocation6 + $0x48] sm:$0xf]
    %v1941 = vld [vmem:[#allocation6 + $0x4c] sm:$0xf]
    %v1942 = vld [vmem:[#allocation6 + $0x50] sm:$0xf]
    %v1943 = vld [vmem:[#allocation6 + $0x54] sm:$0xf]
    %v1944 = vld [vmem:[#allocation6 + $0x58] sm:$0xf]
    %v1945 = vld [vmem:[#allocation6 + $0x5c] sm:$0xf]
    %v1946 = vld [vmem:[#allocation6 + $0x60] sm:$0xf]
    %v1947 = vld [vmem:[#allocation6 + $0x64] sm:$0xf]
    %v1948 = vld [vmem:[#allocation6 + $0x68] sm:$0xf]
    %v1949 = vld [vmem:[#allocation6 + $0x6c] sm:$0xf]
    %v1950 = vld [vmem:[#allocation6 + $0x70] sm:$0xf]
    %v1951 = vld [vmem:[#allocation6 + $0x74] sm:$0xf]
    %v1952 = vld [vmem:[#allocation6 + $0x78] sm:$0xf]
    %v1953 = vld [vmem:[#allocation6 + $0x7c] sm:$0xf]
    %v1954 = vld [vmem:[#allocation6 + $0x80] sm:$0xf]
    %v1955 = vld [vmem:[#allocation6 + $0x84] sm:$0xf]
    %v1956 = vld [vmem:[#allocation6 + $0x88] sm:$0xf]
    %v1957 = vld [vmem:[#allocation6 + $0x8c] sm:$0xf]
    %v1958 = vld [vmem:[#allocation6 + $0x90] sm:$0xf]
    %v1959 = vld [vmem:[#allocation6 + $0x94] sm:$0xf]
    %v1960 = vld [vmem:[#allocation6 + $0x98] sm:$0xf]
    %v1961 = vld [vmem:[#allocation6 + $0x9c] sm:$0xf]
    %v1962 = vld [vmem:[#allocation6 + $0xa0] sm:$0xf]
    %v1963 = vld [vmem:[#allocation6 + $0xa4] sm:$0xf]
    %v1964 = vld [vmem:[#allocation6 + $0xa8] sm:$0xf]
    %v1965 = vld [vmem:[#allocation6 + $0xac] sm:$0xf]
    %v1966 = vld [vmem:[#allocation6 + $0xb0] sm:$0xf]
    %v1967 = vld [vmem:[#allocation6 + $0xb4] sm:$0xf]
    %v1968 = vld [vmem:[#allocation6 + $0xb8] sm:$0xf]
    %v1969 = vld [vmem:[#allocation6 + $0xbc] sm:$0xf]
    %v1970 = vld [vmem:[#allocation6 + $0xc0] sm:$0xf]
    %v1971 = vld [vmem:[#allocation6 + $0xc4] sm:$0xf]
    %v1972 = vld [vmem:[#allocation6 + $0xc8] sm:$0xf]
    %v1973 = vld [vmem:[#allocation6 + $0xcc] sm:$0xf]
    %v1974 = vld [vmem:[#allocation6 + $0xd0] sm:$0xf]
    %v1975 = vld [vmem:[#allocation6 + $0xd4] sm:$0xf]
    %v1976 = vld [vmem:[#allocation6 + $0xd8] sm:$0xf]
    %v1977 = vld [vmem:[#allocation6 + $0xdc] sm:$0xf]
    %v1978 = vld [vmem:[#allocation6 + $0xe0] sm:$0xf]
    %v1979 = vld [vmem:[#allocation6 + $0xe4] sm:$0xf]
    %v1980 = vld [vmem:[#allocation6 + $0xe8] sm:$0xf]
    %v1981 = vld [vmem:[#allocation6 + $0xec] sm:$0xf]
    %v1982 = vld [vmem:[#allocation6 + $0xf0] sm:$0xf]
    %v1983 = vld [vmem:[#allocation6 + $0xf4] sm:$0xf]
    %v1984 = vld [vmem:[#allocation6 + $0xf8] sm:$0xf]
    %v1985 = vld [vmem:[#allocation6 + $0xfc] sm:$0xf]
    %v1986 = vld [vmem:[%s6] sm:$0x1]
    %v1988 = vlaneseq
    %v1989 = vshrl.u32 %v1988, 7
    %v1990 = vsub.s32 0, %v1989
    %v1991 = vrot.slane %v1986, %v1990
    %v2057 = vunpack.c.l.b16 %v1922
    %v2058 = vunpack.c.l.b16 %v1923
    %v2059 = vunpack.c.l.b16 %v1924
    %v2060 = vunpack.c.l.b16 %v1925
    %v2061 = vunpack.c.l.b16 %v1926
    %v2062 = vunpack.c.l.b16 %v1927
    %v2063 = vunpack.c.l.b16 %v1928
    %v2064 = vunpack.c.l.b16 %v1929
    %v2065 = vunpack.c.l.b16 %v1930
    %v2066 = vunpack.c.l.b16 %v1931
    %v2067 = vunpack.c.l.b16 %v1932
    %v2068 = vunpack.c.l.b16 %v1933
    %v2069 = vunpack.c.l.b16 %v1934
    %v2070 = vunpack.c.l.b16 %v1935
    %v2071 = vunpack.c.l.b16 %v1936
    %v2072 = vunpack.c.l.b16 %v1937
    %v2073 = vunpack.c.l.b16 %v1938
    %v2074 = vunpack.c.l.b16 %v1939
    %v2075 = vunpack.c.l.b16 %v1940
    %v2076 = vunpack.c.l.b16 %v1941
    %v2077 = vunpack.c.l.b16 %v1942
    %v2078 = vunpack.c.l.b16 %v1943
    %v2079 = vunpack.c.l.b16 %v1944
    %v2080 = vunpack.c.l.b16 %v1945
    %v2081 = vunpack.c.l.b16 %v1946
    %v2082 = vunpack.c.l.b16 %v1947
    %v2083 = vunpack.c.l.b16 %v1948
    %v2084 = vunpack.c.l.b16 %v1949
    %v2085 = vunpack.c.l.b16 %v1950
    %v2086 = vunpack.c.l.b16 %v1951
    %v2087 = vunpack.c.l.b16 %v1952
    %v2088 = vunpack.c.l.b16 %v1953
    %v2089 = vunpack.c.l.b16 %v1954
    %v2090 = vunpack.c.l.b16 %v1955
    %v2091 = vunpack.c.l.b16 %v1956
    %v2092 = vunpack.c.l.b16 %v1957
    %v2093 = vunpack.c.l.b16 %v1958
    %v2094 = vunpack.c.l.b16 %v1959
    %v2095 = vunpack.c.l.b16 %v1960
    %v2096 = vunpack.c.l.b16 %v1961
    %v2097 = vunpack.c.l.b16 %v1962
    %v2098 = vunpack.c.l.b16 %v1963
    %v2099 = vunpack.c.l.b16 %v1964
    %v2100 = vunpack.c.l.b16 %v1965
    %v2101 = vunpack.c.l.b16 %v1966
    %v2102 = vunpack.c.l.b16 %v1967
    %v2103 = vunpack.c.l.b16 %v1968
    %v2104 = vunpack.c.l.b16 %v1969
    %v2105 = vunpack.c.l.b16 %v1970
    %v2106 = vunpack.c.l.b16 %v1971
    %v2107 = vunpack.c.l.b16 %v1972
    %v2108 = vunpack.c.l.b16 %v1973
    %v2109 = vunpack.c.l.b16 %v1974
    %v2110 = vunpack.c.l.b16 %v1975
    %v2111 = vunpack.c.l.b16 %v1976
    %v2112 = vunpack.c.l.b16 %v1977
    %v2113 = vunpack.c.l.b16 %v1978
    %v2114 = vunpack.c.l.b16 %v1979
    %v2115 = vunpack.c.l.b16 %v1980
    %v2116 = vunpack.c.l.b16 %v1981
    %v2117 = vunpack.c.l.b16 %v1982
    %v2118 = vunpack.c.l.b16 %v1983
    %v2119 = vunpack.c.l.b16 %v1984
    %v2120 = vunpack.c.l.b16 %v1985
    %v2121 = vpack.c.b16 %v2058, %v2057
    %v2122 = vpack.c.b16 %v2060, %v2059
    %v2123 = vpack.c.b16 %v2062, %v2061
    %v2124 = vpack.c.b16 %v2064, %v2063
    %v2125 = vpack.c.b16 %v2066, %v2065
    %v2126 = vpack.c.b16 %v2068, %v2067
    %v2127 = vpack.c.b16 %v2070, %v2069
    %v2128 = vpack.c.b16 %v2072, %v2071
    %v2129 = vpack.c.b16 %v2074, %v2073
    %v2130 = vpack.c.b16 %v2076, %v2075
    %v2131 = vpack.c.b16 %v2078, %v2077
    %v2132 = vpack.c.b16 %v2080, %v2079
    %v2133 = vpack.c.b16 %v2082, %v2081
    %v2134 = vpack.c.b16 %v2084, %v2083
    %v2135 = vpack.c.b16 %v2086, %v2085
    %v2136 = vpack.c.b16 %v2088, %v2087
    %v2137 = vpack.c.b16 %v2090, %v2089
    %v2138 = vpack.c.b16 %v2092, %v2091
    %v2139 = vpack.c.b16 %v2094, %v2093
    %v2140 = vpack.c.b16 %v2096, %v2095
    %v2141 = vpack.c.b16 %v2098, %v2097
    %v2142 = vpack.c.b16 %v2100, %v2099
    %v2143 = vpack.c.b16 %v2102, %v2101
    %v2144 = vpack.c.b16 %v2104, %v2103
    %v2145 = vpack.c.b16 %v2106, %v2105
    %v2146 = vpack.c.b16 %v2108, %v2107
    %v2147 = vpack.c.b16 %v2110, %v2109
    %v2148 = vpack.c.b16 %v2112, %v2111
    %v2149 = vpack.c.b16 %v2114, %v2113
    %v2150 = vpack.c.b16 %v2116, %v2115
    %v2151 = vpack.c.b16 %v2118, %v2117
    %v2152 = vpack.c.b16 %v2120, %v2119
    %2185 = vmatprep.subr.bf16.mxu0 0
    %2186 = vmatpush1.bf16.msra.mxu0 %v2121
    %2187 = vmatprep.subr.bf16.mxu0 0
    %2188 = vmatpush1.bf16.msra.mxu0 %v2122
    %2189 = vmatprep.subr.bf16.mxu0 0
    %2190 = vmatpush1.bf16.msra.mxu0 %v2123
    %2191 = vmatprep.subr.bf16.mxu0 0
    %2192 = vmatpush1.bf16.msra.mxu0 %v2124
    %2193 = vmatprep.subr.bf16.mxu0 0
    %2194 = vmatpush1.bf16.msra.mxu0 %v2125
    %2195 = vmatprep.subr.bf16.mxu0 0
    %2196 = vmatpush1.bf16.msra.mxu0 %v2126
    %2197 = vmatprep.subr.bf16.mxu0 0
    %2198 = vmatpush1.bf16.msra.mxu0 %v2127
    %2199 = vmatprep.subr.bf16.mxu0 0
    %2200 = vmatpush1.bf16.msra.mxu0 %v2128
    %2201 = vmatprep.subr.bf16.mxu0 0
    %2202 = vmatpush1.bf16.msra.mxu0 %v2129
    %2203 = vmatprep.subr.bf16.mxu0 0
    %2204 = vmatpush1.bf16.msra.mxu0 %v2130
    %2205 = vmatprep.subr.bf16.mxu0 0
    %2206 = vmatpush1.bf16.msra.mxu0 %v2131
    %2207 = vmatprep.subr.bf16.mxu0 0
    %2208 = vmatpush1.bf16.msra.mxu0 %v2132
    %2209 = vmatprep.subr.bf16.mxu0 0
    %2210 = vmatpush1.bf16.msra.mxu0 %v2133
    %2211 = vmatprep.subr.bf16.mxu0 0
    %2212 = vmatpush1.bf16.msra.mxu0 %v2134
    %2213 = vmatprep.subr.bf16.mxu0 0
    %2214 = vmatpush1.bf16.msra.mxu0 %v2135
    %2215 = vmatprep.subr.bf16.mxu0 0
    %2216 = vmatpush1.bf16.msra.mxu0 %v2136
    %2217 = vmatprep.mubr.bf16.mxu0 %v1919
    %2218 = vmatmul.mubr.bf16.gmra.mrb[0].mxu0 %v1918
    %v2219 = vpop.f32.mrb[0].mxu0
    %v2220 = vadd.f32 %v1991, %v2219
    %v2221 = vpop.f32.mrb[0].mxu0
    %v2222 = vpop.f32.mrb[0].mxu0
    %v2223 = vpop.f32.mrb[0].mxu0
    %2224 = vdwg.mxu0
    %2225 = vmatprep.subr.bf16.mxu0 0
    %2226 = vmatpush1.bf16.msra.mxu0 %v2137
    %2227 = vmatprep.subr.bf16.mxu0 0
    %2228 = vmatpush1.bf16.msra.mxu0 %v2138
    %2229 = vmatprep.subr.bf16.mxu0 0
    %2230 = vmatpush1.bf16.msra.mxu0 %v2139
    %2231 = vmatprep.subr.bf16.mxu0 0
    %2232 = vmatpush1.bf16.msra.mxu0 %v2140
    %2233 = vmatprep.subr.bf16.mxu0 0
    %2234 = vmatpush1.bf16.msra.mxu0 %v2141
    %2235 = vmatprep.subr.bf16.mxu0 0
    %2236 = vmatpush1.bf16.msra.mxu0 %v2142
    %2237 = vmatprep.subr.bf16.mxu0 0
    %2238 = vmatpush1.bf16.msra.mxu0 %v2143
    %2239 = vmatprep.subr.bf16.mxu0 0
    %2240 = vmatpush1.bf16.msra.mxu0 %v2144
    %2241 = vmatprep.subr.bf16.mxu0 0
    %2242 = vmatpush1.bf16.msra.mxu0 %v2145
    %2243 = vmatprep.subr.bf16.mxu0 0
    %2244 = vmatpush1.bf16.msra.mxu0 %v2146
    %2245 = vmatprep.subr.bf16.mxu0 0
    %2246 = vmatpush1.bf16.msra.mxu0 %v2147
    %2247 = vmatprep.subr.bf16.mxu0 0
    %2248 = vmatpush1.bf16.msra.mxu0 %v2148
    %2249 = vmatprep.subr.bf16.mxu0 0
    %2250 = vmatpush1.bf16.msra.mxu0 %v2149
    %2251 = vmatprep.subr.bf16.mxu0 0
    %2252 = vmatpush1.bf16.msra.mxu0 %v2150
    %2253 = vmatprep.subr.bf16.mxu0 0
    %2254 = vmatpush1.bf16.msra.mxu0 %v2151
    %2255 = vmatprep.subr.bf16.mxu0 0
    %2256 = vmatpush1.bf16.msra.mxu0 %v2152
    %2257 = vmatprep.mubr.bf16.mxu0 %v1921
    %2258 = vmatmul.mubr.bf16.gmra.mrb[0].mxu0 %v1920
    %v2259 = vpop.f32.mrb[0].mxu0
    %v2260 = vadd.f32 %v2220, %v2259
    %v2261 = vpop.f32.mrb[0].mxu0
    %v2262 = vpop.f32.mrb[0].mxu0
    %v2263 = vpop.f32.mrb[0].mxu0
    %2264 = vdwg.mxu0
    %2265 = vst [vmem:[%s7] sm:$0xff] %v2260
    // Predicated region
    $region42: #{encoder_forward.1} parent=1 // pred_check
      _
    $region43: #{encoder_forward.1} parent=1 // pred_check_branch
      %2267 = sbr.rel (0) target = $region45
    $region44: #{encoder_forward.1} parent=1 // pred_region
      _
    $region45: #{encoder_forward.1} parent=1 // pred_fallthru
      _
    // Predicated region
    $region46: #{encoder_forward.1} parent=1 // pred_check
      _
    $region47: #{encoder_forward.1} parent=1 // pred_check_branch
      %2269 = sbr.rel (0) target = $region49
    $region48: #{encoder_forward.1} parent=1 // pred_region
      _
    $region49: #{encoder_forward.1} parent=1 // pred_fallthru
      _
    %2270 = vsyncpa [#allocation3], 1
    %2271 = vsyncpa [#allocation5], 1

</llo_original>
